<compile_context>
chip_gen: v5e
topology: v5e:2x2
jax: 0.10.0
libtpu: 0.0.40
codegen_flags: <defaults>
</compile_context>

<pallas_src>
import functools
import math

import jax
import jax.numpy as jnp
from jax import lax
from jax.experimental import pallas as pl
from jax.experimental.pallas import tpu as pltpu


def _round_up(n, m):
    return ((n + m - 1) // m) * m


# ----------------------------------------------------------------------------
# Kernel 1: row-tiled fused projection  y = x @ w + b   (conv1x1 + folded BNs)
# ----------------------------------------------------------------------------
def _linear_kernel(x_ref, w_ref, b_ref, o_ref):
    o_ref[...] = (
        jnp.dot(x_ref[...], w_ref[...], preferred_element_type=jnp.float32)
        + b_ref[...]
    ).astype(o_ref.dtype)


def pallas_linear(x, w, b, *, tm=256):
    """x: (N, Fin), w: (Fin, Fout), b: (1, Fout) -> (N, Fout) float32."""
    n, fin = x.shape
    fout = w.shape[1]
    tm = min(tm, _round_up(n, 8))
    n_pad = _round_up(n, tm)
    if n_pad != n:
        x = jnp.pad(x, ((0, n_pad - n), (0, 0)))
    out = pl.pallas_call(
        _linear_kernel,
        out_shape=jax.ShapeDtypeStruct((n_pad, fout), jnp.float32),
        grid=(n_pad // tm,),
        in_specs=[
            pl.BlockSpec((tm, fin), lambda i: (i, 0)),
            pl.BlockSpec((fin, fout), lambda i: (0, 0)),
            pl.BlockSpec((1, fout), lambda i: (0, 0)),
        ],
        out_specs=pl.BlockSpec((tm, fout), lambda i: (i, 0)),
        compiler_params=pltpu.CompilerParams(dimension_semantics=("parallel",)),
    )(x, w, b)
    return out[:n] if n_pad != n else out


# ----------------------------------------------------------------------------
# Kernel 2: per-batch-row axial attention, all groups per grid step.
# ----------------------------------------------------------------------------
def _axial_attn_kernel(q_ref, k_ref, v_ref, so_ref, to_ref, o_ref, *, groups):
    # q_ref/k_ref: (1, G, C, dqk); v_ref: (1, G, C, gp); so/to: (G, 1, gp)
    for g in range(groups):  # static unroll: `groups` is a small constant
        qt = q_ref[0, g]     # (C, dqk) -- bn_similarity scale already folded in
        kt = k_ref[0, g]     # (C, dqk)
        vt = v_ref[0, g]     # (C, gp)
        s = lax.dot_general(qt, kt, (((1,), (1,)), ((), ())),
                            preferred_element_type=jnp.float32)       # (C, C)
        s = s - jnp.max(s, axis=-1, keepdims=True)
        e = jnp.exp(s)
        denom = jnp.sum(e, axis=-1, keepdims=True)
        r = pl.reciprocal(denom, approx=True)   # EUP slot (free-ish)
        r = r * (2.0 - denom * r)               # one Newton step -> f32 accuracy
        attn = e * r
        sv = lax.dot_general(attn, vt, (((1,), (0,)), ((), ())),
                             preferred_element_type=jnp.float32)      # (C, gp)
        # fused bn_output affine epilogue
        o_ref[0, g] = (sv * so_ref[g] + to_ref[g]).astype(o_ref.dtype)


# ----------------------------------------------------------------------------
# Full forward (eval mode, with_position=False, stride=1)
# ----------------------------------------------------------------------------
def axial_attention_forward(x, params, *, groups, out_planes, width=False,
                            stride=1, eps=1e-5):
    """x: (NT, C, H, W).  The module's query/value/mask inputs are unused by its
    own forward, so they are not taken here."""
    assert stride == 1  # TODO(synk): AvgPool2d pooling for stride > 1 not implemented
    NT, C0, H0, W0 = x.shape
    gp = out_planes // groups
    dqk = gp // 2
    OP = out_planes
    f32 = jnp.float32

    # ---- the module's permute/view, restructured to a plain row-major matmul ----
    if width:    # x.permute(0, 2, 3, 1).view(NT*H, W, C): conv channels = W
        spatial, in_dim = H0, W0
        x_rows = jnp.transpose(x, (0, 2, 1, 3)).reshape(NT * H0 * C0, W0)
    else:        # x.permute(0, 3, 2, 1).view(NT*W, H, C): conv channels = H
        spatial, in_dim = W0, H0
        x_rows = jnp.transpose(x, (0, 3, 1, 2)).reshape(NT * W0 * C0, H0)
    B = NT * spatial
    assert params["w_qkv"].shape == (2 * OP, in_dim)

    # ---- fold bn_qkv affine (and bn_similarity scale on the q channels) into the conv ----
    sq = params["bnq_g"] / jnp.sqrt(params["bnq_v"] + eps)
    tq = params["bnq_b"] - params["bnq_m"] * sq
    ss = params["bns_g"] / jnp.sqrt(params["bns_v"] + eps)            # (G,)
    ch = jnp.arange(2 * OP)
    extra = jnp.where((ch % (2 * gp)) < dqk, ss[ch // (2 * gp)], 1.0)
    # bn_similarity shift is constant along the softmax axis -> cancels; dropped.
    w_fold = (params["w_qkv"] * (sq * extra)[:, None]).T.astype(f32)  # (in_dim, 2*OP)
    b_fold = (tq * extra).reshape(1, 2 * OP).astype(f32)

    qkv = pallas_linear(x_rows.astype(f32), w_fold, b_fold)           # (B*C, 2*OP)

    # group-major, full-extent per-group layouts so the attention kernel needs no slicing
    qkv = qkv.reshape(B, C0, groups, 2 * gp)
    q_t = jnp.transpose(qkv[:, :, :, :dqk], (0, 2, 1, 3))             # (B, G, C, dqk)
    k_t = jnp.transpose(qkv[:, :, :, dqk:gp], (0, 2, 1, 3))           # (B, G, C, dqk)
    v_t = jnp.transpose(qkv[:, :, :, gp:], (0, 2, 1, 3))              # (B, G, C, gp)

    so = params["bno_g"] / jnp.sqrt(params["bno_v"] + eps)
    to = params["bno_b"] - params["bno_m"] * so
    so_g = so.reshape(groups, 1, gp).astype(f32)
    to_g = to.reshape(groups, 1, gp).astype(f32)

    kernel = functools.partial(_axial_attn_kernel, groups=groups)
    sv = pl.pallas_call(
        kernel,
        out_shape=jax.ShapeDtypeStruct((B, groups, C0, gp), f32),
        grid=(B,),
        in_specs=[
            pl.BlockSpec((1, groups, C0, dqk), lambda b: (b, 0, 0, 0)),
            pl.BlockSpec((1, groups, C0, dqk), lambda b: (b, 0, 0, 0)),
            pl.BlockSpec((1, groups, C0, gp), lambda b: (b, 0, 0, 0)),
            pl.BlockSpec((groups, 1, gp), lambda b: (0, 0, 0)),
            pl.BlockSpec((groups, 1, gp), lambda b: (0, 0, 0)),
        ],
        out_specs=pl.BlockSpec((1, groups, C0, gp), lambda b: (b, 0, 0, 0)),
        compiler_params=pltpu.CompilerParams(dimension_semantics=("parallel",)),
    )(q_t, k_t, v_t, so_g, to_g)

    # ---- the module's trailing reshape / (identity) sum / permute ----
    if width:    # (NT, H, OP, C).permute(0, 3, 2, 1) -> (NT, C, OP, H)
        out = jnp.transpose(sv.reshape(NT, H0, groups, C0, gp),
                            (0, 3, 2, 4, 1)).reshape(NT, C0, OP, H0)
    else:        # (NT, W, OP, C).permute(0, 3, 1, 2) -> (NT, C, W, OP)
        out = jnp.transpose(sv.reshape(NT, W0, groups, C0, gp),
                            (0, 3, 1, 2, 4)).reshape(NT, C0, W0, OP)
    return out


# ----------------------------------------------------------------------------
# Pure-JAX reference mirroring the PyTorch module (eval mode) for verification
# ----------------------------------------------------------------------------
def _bn_eval(x, g, b, m, v, eps, axis):
    shape = [1] * x.ndim
    shape[axis] = -1
    s = g / jnp.sqrt(v + eps)
    return x * s.reshape(shape) + (b - m * s).reshape(shape)


def ref_axial_attention(x, params, *, groups, out_planes, width=False, eps=1e-5):
    xp = jnp.transpose(x, (0, 2, 3, 1)) if width else jnp.transpose(x, (0, 3, 2, 1))
    NT, W, H, C = xp.shape
    xv = xp.reshape(NT * W, H, C)
    gp = out_planes // groups
    qkv0 = jnp.einsum("oh,bhc->boc", params["w_qkv"], xv)
    qkv = _bn_eval(qkv0, params["bnq_g"], params["bnq_b"],
                   params["bnq_m"], params["bnq_v"], eps, axis=1)
    qkv = qkv.reshape(NT * W, groups, gp * 2, C)
    q, k, v = qkv[:, :, :gp // 2], qkv[:, :, gp // 2:gp], qkv[:, :, gp:]
    qk = jnp.einsum("bgci,bgcj->bgij", q, k)
    qk = _bn_eval(qk, params["bns_g"], params["bns_b"],
                  params["bns_m"], params["bns_v"], eps, axis=1)
    sim = jax.nn.softmax(qk, axis=3)
    sv = jnp.einsum("bgij,bgcj->bgci", sim, v)
    sv = sv.reshape(NT * W, out_planes, C)
    sv = _bn_eval(sv, params["bno_g"], params["bno_b"],
                  params["bno_m"], params["bno_v"], eps, axis=1)
    out = sv.reshape(NT, W, out_planes, 1, C).sum(axis=-2)
    if width:
        return jnp.transpose(out, (0, 3, 2, 1))
    return jnp.transpose(out, (0, 3, 1, 2))


# ----------------------------------------------------------------------------
if __name__ == "__main__":
    NT, C0, H0, W0 = 2, 24, 16, 16        # in_planes == H0 == W0 so both axes work
    in_planes = 16
    out_planes, groups = 32, 4

    kiter = iter(jax.random.split(jax.random.PRNGKey(0), 32))

    def nk():
        return next(kiter)

    def bn_params(n):
        return dict(
            g=1.0 + 0.1 * jax.random.normal(nk(), (n,), jnp.float32),
            b=0.05 * jax.random.normal(nk(), (n,), jnp.float32),
            m=0.05 * jax.random.normal(nk(), (n,), jnp.float32),
            v=1.0 + 0.2 * jax.random.uniform(nk(), (n,), jnp.float32),
        )

    bnq, bns, bno = bn_params(2 * out_planes), bn_params(groups), bn_params(out_planes)
    params = {
        "w_qkv": math.sqrt(1.0 / in_planes)
                 * jax.random.normal(nk(), (2 * out_planes, in_planes), jnp.float32),
        "bnq_g": bnq["g"], "bnq_b": bnq["b"], "bnq_m": bnq["m"], "bnq_v": bnq["v"],
        "bns_g": bns["g"], "bns_b": bns["b"], "bns_m": bns["m"], "bns_v": bns["v"],
        "bno_g": bno["g"], "bno_b": bno["b"], "bno_m": bno["m"], "bno_v": bno["v"],
    }
    x = jax.random.normal(nk(), (NT, C0, H0, W0), jnp.float32)

    for width in (False, True):
        fwd = jax.jit(functools.partial(axial_attention_forward,
                                        groups=groups, out_planes=out_planes,
                                        width=width))
        out = jax.block_until_ready(fwd(x, params))
        ref = ref_axial_attention(x, params, groups=groups,
                                  out_planes=out_planes, width=width)
        assert out.shape == ref.shape, (out.shape, ref.shape)
        err = float(jnp.max(jnp.abs(out - ref)))
        assert jnp.allclose(out, ref, atol=1e-3, rtol=1e-3), (
            f"width={width} max abs err {err}")

    print("KERNEL_OK")
</pallas_src>

<mosaic_0001>
module attributes {stable_mosaic.version = 11 : i64} {
  func.func @_linear_kernel(%arg0: i32, %arg1: memref<256x16xf32, #tpu.memory_space<vmem>>, %arg2: memref<16x64xf32, #tpu.memory_space<vmem>>, %arg3: memref<1x64xf32, #tpu.memory_space<vmem>>, %arg4: memref<256x64xf32, #tpu.memory_space<vmem>>) attributes {dimension_semantics = [#tpu.dimension_semantics<parallel>], iteration_bounds = array<i64: 3>, scalar_prefetch = 0 : i64, scratch_operands = 0 : i64, tpu.core_type = #tpu.core_type<tc>, window_params = [{transform_indices = @transform_0, window_bounds = array<i64: 256, 16>}, {pipeline_mode = #tpu.pipeline_mode<synchronous>, transform_indices = @transform_1, window_bounds = array<i64: 16, 64>}, {pipeline_mode = #tpu.pipeline_mode<synchronous>, transform_indices = @transform_2, window_bounds = array<i64: 1, 64>}, {transform_indices = @transform_3, window_bounds = array<i64: 256, 64>}]} {
    %c0 = arith.constant 0 : index
    %c0_0 = arith.constant 0 : index
    %0 = vector.load %arg1[%c0, %c0_0] : memref<256x16xf32, #tpu.memory_space<vmem>>, vector<256x16xf32>
    %c0_1 = arith.constant 0 : index
    %c0_2 = arith.constant 0 : index
    %1 = vector.load %arg2[%c0_1, %c0_2] : memref<16x64xf32, #tpu.memory_space<vmem>>, vector<16x64xf32>
    %cst = arith.constant dense<0.000000e+00> : vector<256x64xf32>
    %2 = tpu.matmul %0, %1, %cst {dimension_numbers = #tpu.dot_dimension_numbers<[1], [0], [0], [1], [0, 0, 1, 1], [], []>} : vector<256x16xf32>, vector<16x64xf32>, vector<256x64xf32> -> vector<256x64xf32>
    %c0_3 = arith.constant 0 : index
    %c0_4 = arith.constant 0 : index
    %3 = vector.load %arg3[%c0_3, %c0_4] : memref<1x64xf32, #tpu.memory_space<vmem>>, vector<1x64xf32>
    %4 = vector.broadcast %3 : vector<1x64xf32> to vector<256x64xf32>
    %5 = arith.addf %2, %4 : vector<256x64xf32>
    %c0_5 = arith.constant 0 : index
    %c0_6 = arith.constant 0 : index
    %6 = vector.load %arg4[%c0_5, %c0_6] : memref<256x64xf32, #tpu.memory_space<vmem>>, vector<256x64xf32>
    tpu.vector_store %arg4[%c0_5, %c0_6], %5 {strides = array<i32>} : memref<256x64xf32, #tpu.memory_space<vmem>>, vector<256x64xf32>,
    return
  }
  func.func @transform_0(%arg0: i32) -> (i32, i32) {
    %c0_i32 = arith.constant 0 : i32
    %c0_i32_0 = arith.constant 0 : i32
    return %arg0, %c0_i32 : i32, i32
  }
  func.func @transform_1(%arg0: i32) -> (i32, i32) {
    %c0_i32 = arith.constant 0 : i32
    %c0_i32_0 = arith.constant 0 : i32
    %c0_i32_1 = arith.constant 0 : i32
    return %c0_i32, %c0_i32_0 : i32, i32
  }
  func.func @transform_2(%arg0: i32) -> (i32, i32) {
    %c0_i32 = arith.constant 0 : i32
    %c0_i32_0 = arith.constant 0 : i32
    %c0_i32_1 = arith.constant 0 : i32
    return %c0_i32, %c0_i32_0 : i32, i32
  }
  func.func @transform_3(%arg0: i32) -> (i32, i32) {
    %c0_i32 = arith.constant 0 : i32
    %c0_i32_0 = arith.constant 0 : i32
    return %arg0, %c0_i32 : i32, i32
  }
}

module attributes {stable_mosaic.version = 11 : i64} {
  func.func @_axial_attn_kernel(%arg0: i32, %arg1: memref<1x4x24x4xf32, #tpu.memory_space<vmem>>, %arg2: memref<1x4x24x4xf32, #tpu.memory_space<vmem>>, %arg3: memref<1x4x24x8xf32, #tpu.memory_space<vmem>>, %arg4: memref<4x1x8xf32, #tpu.memory_space<vmem>>, %arg5: memref<4x1x8xf32, #tpu.memory_space<vmem>>, %arg6: memref<1x4x24x8xf32, #tpu.memory_space<vmem>>) attributes {dimension_semantics = [#tpu.dimension_semantics<parallel>], iteration_bounds = array<i64: 32>, scalar_prefetch = 0 : i64, scratch_operands = 0 : i64, tpu.core_type = #tpu.core_type<tc>, window_params = [{transform_indices = @transform_0, window_bounds = array<i64: 1, 4, 24, 4>}, {transform_indices = @transform_1, window_bounds = array<i64: 1, 4, 24, 4>}, {transform_indices = @transform_2, window_bounds = array<i64: 1, 4, 24, 8>}, {pipeline_mode = #tpu.pipeline_mode<synchronous>, transform_indices = @transform_3, window_bounds = array<i64: 4, 1, 8>}, {pipeline_mode = #tpu.pipeline_mode<synchronous>, transform_indices = @transform_4, window_bounds = array<i64: 4, 1, 8>}, {transform_indices = @transform_5, window_bounds = array<i64: 1, 4, 24, 8>}]} {
    %c0 = arith.constant 0 : index
    %c0_0 = arith.constant 0 : index
    %c0_1 = arith.constant 0 : index
    %c0_2 = arith.constant 0 : index
    %0 = vector.load %arg1[%c0, %c0_0, %c0_1, %c0_2] : memref<1x4x24x4xf32, #tpu.memory_space<vmem>>, vector<1x1x24x4xf32>
    %1 = vector.shape_cast %0 : vector<1x1x24x4xf32> to vector<24x4xf32>
    %c0_3 = arith.constant 0 : index
    %c0_4 = arith.constant 0 : index
    %c0_5 = arith.constant 0 : index
    %c0_6 = arith.constant 0 : index
    %2 = vector.load %arg2[%c0_3, %c0_4, %c0_5, %c0_6] : memref<1x4x24x4xf32, #tpu.memory_space<vmem>>, vector<1x1x24x4xf32>
    %3 = vector.shape_cast %2 : vector<1x1x24x4xf32> to vector<24x4xf32>
    %c0_7 = arith.constant 0 : index
    %c0_8 = arith.constant 0 : index
    %c0_9 = arith.constant 0 : index
    %c0_10 = arith.constant 0 : index
    %4 = vector.load %arg3[%c0_7, %c0_8, %c0_9, %c0_10] : memref<1x4x24x8xf32, #tpu.memory_space<vmem>>, vector<1x1x24x8xf32>
    %5 = vector.shape_cast %4 : vector<1x1x24x8xf32> to vector<24x8xf32>
    %cst = arith.constant dense<0.000000e+00> : vector<24x24xf32>
    %6 = tpu.matmul %1, %3, %cst {dimension_numbers = #tpu.dot_dimension_numbers<[1], [1], [0], [0], [0, 0, 1, 0], [], []>} : vector<24x4xf32>, vector<24x4xf32>, vector<24x24xf32> -> vector<24x24xf32>
    %cst_11 = arith.constant dense<0xFF800000> : vector<24xf32>
    %7 = vector.multi_reduction <maximumf>, %6, %cst_11 [1] : vector<24x24xf32> to vector<24xf32>
    %8 = vector.shape_cast %7 : vector<24xf32> to vector<24x1xf32>
    %9 = vector.broadcast %8 : vector<24x1xf32> to vector<24x24xf32>
    %10 = arith.subf %6, %9 : vector<24x24xf32>
    %11 = math.exp %10 : vector<24x24xf32>
    %cst_12 = arith.constant dense<0.000000e+00> : vector<24xf32>
    %12 = vector.multi_reduction <add>, %11, %cst_12 [1] : vector<24x24xf32> to vector<24xf32>
    %13 = vector.shape_cast %12 : vector<24xf32> to vector<24x1xf32>
    %14 = tpu.reciprocal %13 {approx = true} : vector<24x1xf32> -> vector<24x1xf32>
    %15 = arith.mulf %13, %14 : vector<24x1xf32>
    %cst_13 = arith.constant 2.000000e+00 : f32
    %16 = vector.broadcast %cst_13 : f32 to vector<24x1xf32>
    %17 = arith.subf %16, %15 : vector<24x1xf32>
    %18 = arith.mulf %14, %17 : vector<24x1xf32>
    %19 = vector.broadcast %18 : vector<24x1xf32> to vector<24x24xf32>
    %20 = arith.mulf %11, %19 : vector<24x24xf32>
    %cst_14 = arith.constant dense<0.000000e+00> : vector<24x8xf32>
    %21 = tpu.matmul %20, %5, %cst_14 {dimension_numbers = #tpu.dot_dimension_numbers<[1], [0], [0], [1], [0, 0, 1, 1], [], []>} : vector<24x24xf32>, vector<24x8xf32>, vector<24x8xf32> -> vector<24x8xf32>
    %c0_15 = arith.constant 0 : index
    %c0_16 = arith.constant 0 : index
    %c0_17 = arith.constant 0 : index
    %22 = vector.load %arg4[%c0_15, %c0_16, %c0_17] : memref<4x1x8xf32, #tpu.memory_space<vmem>>, vector<1x1x8xf32>
    %23 = vector.shape_cast %22 : vector<1x1x8xf32> to vector<1x8xf32>
    %24 = vector.broadcast %23 : vector<1x8xf32> to vector<24x8xf32>
    %25 = arith.mulf %21, %24 : vector<24x8xf32>
    %c0_18 = arith.constant 0 : index
    %c0_19 = arith.constant 0 : index
    %c0_20 = arith.constant 0 : index
    %26 = vector.load %arg5[%c0_18, %c0_19, %c0_20] : memref<4x1x8xf32, #tpu.memory_space<vmem>>, vector<1x1x8xf32>
    %27 = vector.shape_cast %26 : vector<1x1x8xf32> to vector<1x8xf32>
    %28 = vector.broadcast %27 : vector<1x8xf32> to vector<24x8xf32>
    %29 = arith.addf %25, %28 : vector<24x8xf32>
    %c0_21 = arith.constant 0 : index
    %c0_22 = arith.constant 0 : index
    %c0_23 = arith.constant 0 : index
    %c0_24 = arith.constant 0 : index
    %30 = vector.load %arg6[%c0_21, %c0_22, %c0_23, %c0_24] : memref<1x4x24x8xf32, #tpu.memory_space<vmem>>, vector<1x1x24x8xf32>
    %31 = vector.shape_cast %30 : vector<1x1x24x8xf32> to vector<24x8xf32>
    %32 = vector.shape_cast %29 : vector<24x8xf32> to vector<1x1x24x8xf32>
    tpu.vector_store %arg6[%c0_21, %c0_22, %c0_23, %c0_24], %32 {strides = array<i32>} : memref<1x4x24x8xf32, #tpu.memory_space<vmem>>, vector<1x1x24x8xf32>,
    %c0_25 = arith.constant 0 : index
    %c1 = arith.constant 1 : index
    %c0_26 = arith.constant 0 : index
    %c0_27 = arith.constant 0 : index
    %33 = vector.load %arg1[%c0_25, %c1, %c0_26, %c0_27] : memref<1x4x24x4xf32, #tpu.memory_space<vmem>>, vector<1x1x24x4xf32>
    %34 = vector.shape_cast %33 : vector<1x1x24x4xf32> to vector<24x4xf32>
    %c0_28 = arith.constant 0 : index
    %c1_29 = arith.constant 1 : index
    %c0_30 = arith.constant 0 : index
    %c0_31 = arith.constant 0 : index
    %35 = vector.load %arg2[%c0_28, %c1_29, %c0_30, %c0_31] : memref<1x4x24x4xf32, #tpu.memory_space<vmem>>, vector<1x1x24x4xf32>
    %36 = vector.shape_cast %35 : vector<1x1x24x4xf32> to vector<24x4xf32>
    %c0_32 = arith.constant 0 : index
    %c1_33 = arith.constant 1 : index
    %c0_34 = arith.constant 0 : index
    %c0_35 = arith.constant 0 : index
    %37 = vector.load %arg3[%c0_32, %c1_33, %c0_34, %c0_35] : memref<1x4x24x8xf32, #tpu.memory_space<vmem>>, vector<1x1x24x8xf32>
    %38 = vector.shape_cast %37 : vector<1x1x24x8xf32> to vector<24x8xf32>
    %cst_36 = arith.constant dense<0.000000e+00> : vector<24x24xf32>
    %39 = tpu.matmul %34, %36, %cst_36 {dimension_numbers = #tpu.dot_dimension_numbers<[1], [1], [0], [0], [0, 0, 1, 0], [], []>} : vector<24x4xf32>, vector<24x4xf32>, vector<24x24xf32> -> vector<24x24xf32>
    %cst_37 = arith.constant dense<0xFF800000> : vector<24xf32>
    %40 = vector.multi_reduction <maximumf>, %39, %cst_37 [1] : vector<24x24xf32> to vector<24xf32>
    %41 = vector.shape_cast %40 : vector<24xf32> to vector<24x1xf32>
    %42 = vector.broadcast %41 : vector<24x1xf32> to vector<24x24xf32>
    %43 = arith.subf %39, %42 : vector<24x24xf32>
    %44 = math.exp %43 : vector<24x24xf32>
    %cst_38 = arith.constant dense<0.000000e+00> : vector<24xf32>
    %45 = vector.multi_reduction <add>, %44, %cst_38 [1] : vector<24x24xf32> to vector<24xf32>
    %46 = vector.shape_cast %45 : vector<24xf32> to vector<24x1xf32>
    %47 = tpu.reciprocal %46 {approx = true} : vector<24x1xf32> -> vector<24x1xf32>
    %48 = arith.mulf %46, %47 : vector<24x1xf32>
    %cst_39 = arith.constant 2.000000e+00 : f32
    %49 = vector.broadcast %cst_39 : f32 to vector<24x1xf32>
    %50 = arith.subf %49, %48 : vector<24x1xf32>
    %51 = arith.mulf %47, %50 : vector<24x1xf32>
    %52 = vector.broadcast %51 : vector<24x1xf32> to vector<24x24xf32>
    %53 = arith.mulf %44, %52 : vector<24x24xf32>
    %cst_40 = arith.constant dense<0.000000e+00> : vector<24x8xf32>
    %54 = tpu.matmul %53, %38, %cst_40 {dimension_numbers = #tpu.dot_dimension_numbers<[1], [0], [0], [1], [0, 0, 1, 1], [], []>} : vector<24x24xf32>, vector<24x8xf32>, vector<24x8xf32> -> vector<24x8xf32>
    %c1_41 = arith.constant 1 : index
    %c0_42 = arith.constant 0 : index
    %c0_43 = arith.constant 0 : index
    %55 = vector.load %arg4[%c1_41, %c0_42, %c0_43] : memref<4x1x8xf32, #tpu.memory_space<vmem>>, vector<1x1x8xf32>
    %56 = vector.shape_cast %55 : vector<1x1x8xf32> to vector<1x8xf32>
    %57 = vector.broadcast %56 : vector<1x8xf32> to vector<24x8xf32>
    %58 = arith.mulf %54, %57 : vector<24x8xf32>
    %c1_44 = arith.constant 1 : index
    %c0_45 = arith.constant 0 : index
    %c0_46 = arith.constant 0 : index
    %59 = vector.load %arg5[%c1_44, %c0_45, %c0_46] : memref<4x1x8xf32, #tpu.memory_space<vmem>>, vector<1x1x8xf32>
    %60 = vector.shape_cast %59 : vector<1x1x8xf32> to vector<1x8xf32>
    %61 = vector.broadcast %60 : vector<1x8xf32> to vector<24x8xf32>
    %62 = arith.addf %58, %61 : vector<24x8xf32>
    %c0_47 = arith.constant 0 : index
    %c1_48 = arith.constant 1 : index
    %c0_49 = arith.constant 0 : index
    %c0_50 = arith.constant 0 : index
    %63 = vector.load %arg6[%c0_47, %c1_48, %c0_49, %c0_50] : memref<1x4x24x8xf32, #tpu.memory_space<vmem>>, vector<1x1x24x8xf32>
    %64 = vector.shape_cast %63 : vector<1x1x24x8xf32> to vector<24x8xf32>
    %65 = vector.shape_cast %62 : vector<24x8xf32> to vector<1x1x24x8xf32>
    tpu.vector_store %arg6[%c0_47, %c1_48, %c0_49, %c0_50], %65 {strides = array<i32>} : memref<1x4x24x8xf32, #tpu.memory_space<vmem>>, vector<1x1x24x8xf32>,
    %c0_51 = arith.constant 0 : index
    %c2 = arith.constant 2 : index
    %c0_52 = arith.constant 0 : index
    %c0_53 = arith.constant 0 : index
    %66 = vector.load %arg1[%c0_51, %c2, %c0_52, %c0_53] : memref<1x4x24x4xf32, #tpu.memory_space<vmem>>, vector<1x1x24x4xf32>
    %67 = vector.shape_cast %66 : vector<1x1x24x4xf32> to vector<24x4xf32>
    %c0_54 = arith.constant 0 : index
    %c2_55 = arith.constant 2 : index
    %c0_56 = arith.constant 0 : index
    %c0_57 = arith.constant 0 : index
    %68 = vector.load %arg2[%c0_54, %c2_55, %c0_56, %c0_57] : memref<1x4x24x4xf32, #tpu.memory_space<vmem>>, vector<1x1x24x4xf32>
    %69 = vector.shape_cast %68 : vector<1x1x24x4xf32> to vector<24x4xf32>
    %c0_58 = arith.constant 0 : index
    %c2_59 = arith.constant 2 : index
    %c0_60 = arith.constant 0 : index
    %c0_61 = arith.constant 0 : index
    %70 = vector.load %arg3[%c0_58, %c2_59, %c0_60, %c0_61] : memref<1x4x24x8xf32, #tpu.memory_space<vmem>>, vector<1x1x24x8xf32>
    %71 = vector.shape_cast %70 : vector<1x1x24x8xf32> to vector<24x8xf32>
    %cst_62 = arith.constant dense<0.000000e+00> : vector<24x24xf32>
    %72 = tpu.matmul %67, %69, %cst_62 {dimension_numbers = #tpu.dot_dimension_numbers<[1], [1], [0], [0], [0, 0, 1, 0], [], []>} : vector<24x4xf32>, vector<24x4xf32>, vector<24x24xf32> -> vector<24x24xf32>
    %cst_63 = arith.constant dense<0xFF800000> : vector<24xf32>
    %73 = vector.multi_reduction <maximumf>, %72, %cst_63 [1] : vector<24x24xf32> to vector<24xf32>
    %74 = vector.shape_cast %73 : vector<24xf32> to vector<24x1xf32>
    %75 = vector.broadcast %74 : vector<24x1xf32> to vector<24x24xf32>
    %76 = arith.subf %72, %75 : vector<24x24xf32>
    %77 = math.exp %76 : vector<24x24xf32>
    %cst_64 = arith.constant dense<0.000000e+00> : vector<24xf32>
    %78 = vector.multi_reduction <add>, %77, %cst_64 [1] : vector<24x24xf32> to vector<24xf32>
    %79 = vector.shape_cast %78 : vector<24xf32> to vector<24x1xf32>
    %80 = tpu.reciprocal %79 {approx = true} : vector<24x1xf32> -> vector<24x1xf32>
    %81 = arith.mulf %79, %80 : vector<24x1xf32>
    %cst_65 = arith.constant 2.000000e+00 : f32
    %82 = vector.broadcast %cst_65 : f32 to vector<24x1xf32>
    %83 = arith.subf %82, %81 : vector<24x1xf32>
    %84 = arith.mulf %80, %83 : vector<24x1xf32>
    %85 = vector.broadcast %84 : vector<24x1xf32> to vector<24x24xf32>
    %86 = arith.mulf %77, %85 : vector<24x24xf32>
    %cst_66 = arith.constant dense<0.000000e+00> : vector<24x8xf32>
    %87 = tpu.matmul %86, %71, %cst_66 {dimension_numbers = #tpu.dot_dimension_numbers<[1], [0], [0], [1], [0, 0, 1, 1], [], []>} : vector<24x24xf32>, vector<24x8xf32>, vector<24x8xf32> -> vector<24x8xf32>
    %c2_67 = arith.constant 2 : index
    %c0_68 = arith.constant 0 : index
    %c0_69 = arith.constant 0 : index
    %88 = vector.load %arg4[%c2_67, %c0_68, %c0_69] : memref<4x1x8xf32, #tpu.memory_space<vmem>>, vector<1x1x8xf32>
    %89 = vector.shape_cast %88 : vector<1x1x8xf32> to vector<1x8xf32>
    %90 = vector.broadcast %89 : vector<1x8xf32> to vector<24x8xf32>
    %91 = arith.mulf %87, %90 : vector<24x8xf32>
    %c2_70 = arith.constant 2 : index
    %c0_71 = arith.constant 0 : index
    %c0_72 = arith.constant 0 : index
    %92 = vector.load %arg5[%c2_70, %c0_71, %c0_72] : memref<4x1x8xf32, #tpu.memory_space<vmem>>, vector<1x1x8xf32>
    %93 = vector.shape_cast %92 : vector<1x1x8xf32> to vector<1x8xf32>
    %94 = vector.broadcast %93 : vector<1x8xf32> to vector<24x8xf32>
    %95 = arith.addf %91, %94 : vector<24x8xf32>
    %c0_73 = arith.constant 0 : index
    %c2_74 = arith.constant 2 : index
    %c0_75 = arith.constant 0 : index
    %c0_76 = arith.constant 0 : index
    %96 = vector.load %arg6[%c0_73, %c2_74, %c0_75, %c0_76] : memref<1x4x24x8xf32, #tpu.memory_space<vmem>>, vector<1x1x24x8xf32>
    %97 = vector.shape_cast %96 : vector<1x1x24x8xf32> to vector<24x8xf32>
    %98 = vector.shape_cast %95 : vector<24x8xf32> to vector<1x1x24x8xf32>
    tpu.vector_store %arg6[%c0_73, %c2_74, %c0_75, %c0_76], %98 {strides = array<i32>} : memref<1x4x24x8xf32, #tpu.memory_space<vmem>>, vector<1x1x24x8xf32>,
    %c0_77 = arith.constant 0 : index
    %c3 = arith.constant 3 : index
    %c0_78 = arith.constant 0 : index
    %c0_79 = arith.constant 0 : index
    %99 = vector.load %arg1[%c0_77, %c3, %c0_78, %c0_79] : memref<1x4x24x4xf32, #tpu.memory_space<vmem>>, vector<1x1x24x4xf32>
    %100 = vector.shape_cast %99 : vector<1x1x24x4xf32> to vector<24x4xf32>
    %c0_80 = arith.constant 0 : index
    %c3_81 = arith.constant 3 : index
    %c0_82 = arith.constant 0 : index
    %c0_83 = arith.constant 0 : index
    %101 = vector.load %arg2[%c0_80, %c3_81, %c0_82, %c0_83] : memref<1x4x24x4xf32, #tpu.memory_space<vmem>>, vector<1x1x24x4xf32>
    %102 = vector.shape_cast %101 : vector<1x1x24x4xf32> to vector<24x4xf32>
    %c0_84 = arith.constant 0 : index
    %c3_85 = arith.constant 3 : index
    %c0_86 = arith.constant 0 : index
    %c0_87 = arith.constant 0 : index
    %103 = vector.load %arg3[%c0_84, %c3_85, %c0_86, %c0_87] : memref<1x4x24x8xf32, #tpu.memory_space<vmem>>, vector<1x1x24x8xf32>
    %104 = vector.shape_cast %103 : vector<1x1x24x8xf32> to vector<24x8xf32>
    %cst_88 = arith.constant dense<0.000000e+00> : vector<24x24xf32>
    %105 = tpu.matmul %100, %102, %cst_88 {dimension_numbers = #tpu.dot_dimension_numbers<[1], [1], [0], [0], [0, 0, 1, 0], [], []>} : vector<24x4xf32>, vector<24x4xf32>, vector<24x24xf32> -> vector<24x24xf32>
    %cst_89 = arith.constant dense<0xFF800000> : vector<24xf32>
    %106 = vector.multi_reduction <maximumf>, %105, %cst_89 [1] : vector<24x24xf32> to vector<24xf32>
    %107 = vector.shape_cast %106 : vector<24xf32> to vector<24x1xf32>
    %108 = vector.broadcast %107 : vector<24x1xf32> to vector<24x24xf32>
    %109 = arith.subf %105, %108 : vector<24x24xf32>
    %110 = math.exp %109 : vector<24x24xf32>
    %cst_90 = arith.constant dense<0.000000e+00> : vector<24xf32>
    %111 = vector.multi_reduction <add>, %110, %cst_90 [1] : vector<24x24xf32> to vector<24xf32>
    %112 = vector.shape_cast %111 : vector<24xf32> to vector<24x1xf32>
    %113 = tpu.reciprocal %112 {approx = true} : vector<24x1xf32> -> vector<24x1xf32>
    %114 = arith.mulf %112, %113 : vector<24x1xf32>
    %cst_91 = arith.constant 2.000000e+00 : f32
    %115 = vector.broadcast %cst_91 : f32 to vector<24x1xf32>
    %116 = arith.subf %115, %114 : vector<24x1xf32>
    %117 = arith.mulf %113, %116 : vector<24x1xf32>
    %118 = vector.broadcast %117 : vector<24x1xf32> to vector<24x24xf32>
    %119 = arith.mulf %110, %118 : vector<24x24xf32>
    %cst_92 = arith.constant dense<0.000000e+00> : vector<24x8xf32>
    %120 = tpu.matmul %119, %104, %cst_92 {dimension_numbers = #tpu.dot_dimension_numbers<[1], [0], [0], [1], [0, 0, 1, 1], [], []>} : vector<24x24xf32>, vector<24x8xf32>, vector<24x8xf32> -> vector<24x8xf32>
    %c3_93 = arith.constant 3 : index
    %c0_94 = arith.constant 0 : index
    %c0_95 = arith.constant 0 : index
    %121 = vector.load %arg4[%c3_93, %c0_94, %c0_95] : memref<4x1x8xf32, #tpu.memory_space<vmem>>, vector<1x1x8xf32>
    %122 = vector.shape_cast %121 : vector<1x1x8xf32> to vector<1x8xf32>
    %123 = vector.broadcast %122 : vector<1x8xf32> to vector<24x8xf32>
    %124 = arith.mulf %120, %123 : vector<24x8xf32>
    %c3_96 = arith.constant 3 : index
    %c0_97 = arith.constant 0 : index
    %c0_98 = arith.constant 0 : index
    %125 = vector.load %arg5[%c3_96, %c0_97, %c0_98] : memref<4x1x8xf32, #tpu.memory_space<vmem>>, vector<1x1x8xf32>
    %126 = vector.shape_cast %125 : vector<1x1x8xf32> to vector<1x8xf32>
    %127 = vector.broadcast %126 : vector<1x8xf32> to vector<24x8xf32>
    %128 = arith.addf %124, %127 : vector<24x8xf32>
    %c0_99 = arith.constant 0 : index
    %c3_100 = arith.constant 3 : index
    %c0_101 = arith.constant 0 : index
    %c0_102 = arith.constant 0 : index
    %129 = vector.load %arg6[%c0_99, %c3_100, %c0_101, %c0_102] : memref<1x4x24x8xf32, #tpu.memory_space<vmem>>, vector<1x1x24x8xf32>
    %130 = vector.shape_cast %129 : vector<1x1x24x8xf32> to vector<24x8xf32>
    %131 = vector.shape_cast %128 : vector<24x8xf32> to vector<1x1x24x8xf32>
    tpu.vector_store %arg6[%c0_99, %c3_100, %c0_101, %c0_102], %131 {strides = array<i32>} : memref<1x4x24x8xf32, #tpu.memory_space<vmem>>, vector<1x1x24x8xf32>,
    return
  }
  func.func @transform_0(%arg0: i32) -> (i32, i32, i32, i32) {
    %c0_i32 = arith.constant 0 : i32
    %c0_i32_0 = arith.constant 0 : i32
    %c0_i32_1 = arith.constant 0 : i32
    %c0_i32_2 = arith.constant 0 : i32
    return %arg0, %c0_i32, %c0_i32_0, %c0_i32_1 : i32, i32, i32, i32
  }
  func.func @transform_1(%arg0: i32) -> (i32, i32, i32, i32) {
    %c0_i32 = arith.constant 0 : i32
    %c0_i32_0 = arith.constant 0 : i32
    %c0_i32_1 = arith.constant 0 : i32
    %c0_i32_2 = arith.constant 0 : i32
    return %arg0, %c0_i32, %c0_i32_0, %c0_i32_1 : i32, i32, i32, i32
  }
  func.func @transform_2(%arg0: i32) -> (i32, i32, i32, i32) {
    %c0_i32 = arith.constant 0 : i32
    %c0_i32_0 = arith.constant 0 : i32
    %c0_i32_1 = arith.constant 0 : i32
    %c0_i32_2 = arith.constant 0 : i32
    return %arg0, %c0_i32, %c0_i32_0, %c0_i32_1 : i32, i32, i32, i32
  }
  func.func @transform_3(%arg0: i32) -> (i32, i32, i32) {
    %c0_i32 = arith.constant 0 : i32
    %c0_i32_0 = arith.constant 0 : i32
    %c0_i32_1 = arith.constant 0 : i32
    %c0_i32_2 = arith.constant 0 : i32
    return %c0_i32, %c0_i32_0, %c0_i32_1 : i32, i32, i32
  }
  func.func @transform_4(%arg0: i32) -> (i32, i32, i32) {
    %c0_i32 = arith.constant 0 : i32
    %c0_i32_0 = arith.constant 0 : i32
    %c0_i32_1 = arith.constant 0 : i32
    %c0_i32_2 = arith.constant 0 : i32
    return %c0_i32, %c0_i32_0, %c0_i32_1 : i32, i32, i32
  }
  func.func @transform_5(%arg0: i32) -> (i32, i32, i32, i32) {
    %c0_i32 = arith.constant 0 : i32
    %c0_i32_0 = arith.constant 0 : i32
    %c0_i32_1 = arith.constant 0 : i32
    %c0_i32_2 = arith.constant 0 : i32
    return %arg0, %c0_i32, %c0_i32_0, %c0_i32_1 : i32, i32, i32, i32
  }
}

</mosaic_0001>

<llo_original>
// kernel: axial_attention_forward.2
$region0: #{axial_attention_forward.2}
  #allocation0 [shape = 'u32[]', space=smem, size = 0x4, offset = 0x4, fixed_abs, tag = 'smem constant byte address 0x4 - core index']
  #allocation1 [shape = 'u32[72,128]{1,0:T(1,128)}', space=vmem, size = 0x9000, scoped, tag = 'internal scratch']
  %s0 = inlined_call_operand.vmem [shape: f32[768,16], index: 0, kind: input, shape index: {}]
  %s1 = inlined_call_operand.vmem [shape: f32[16,64], index: 1, kind: input, shape index: {}]
  %s2 = inlined_call_operand.vmem [shape: f32[1,64], index: 2, kind: input, shape index: {}]
  %s3 = inlined_call_operand.vmem [shape: f32[768,64], index: 3, kind: output, shape index: {}]
  %s4 = sld [smem:[#allocation0]]
  $region45: #{axial_attention_forward.2} parent=0
    _
  %s6 = ssub.s32 1, %s4
  %s7 = scalar_select 0, %s6, %s4
  loop: start=0, step=1, limit=5
  $region2: #{axial_attention_forward.2} parent=0 // loop_pre_header
    _
  $region3: #{axial_attention_forward.2} parent=0 // loop_header
    %s9 = sphi 0, %s13
    %p10 = scmp.ge.s32.totalorder %s9, 5
    %s19 = sphi 0, %s21
    %s22 = sphi 0, %s19
    %s23 = sphi 0, %s22
    %s39 = sphi 0, %s23
    %s43 = sphi 0, %s43
    %s45 = sphi 0, %s43
    %s46 = sphi 0, %s45
    %s60 = sphi 0, %s46
    %s64 = sphi 0, %s64
    %s66 = sphi 0, %s64
    %s67 = sphi 0, %s66
    %s81 = sphi 0, %s67
    %s87 = sphi 0, %s89
    %s90 = sphi 0, %s87
    %s91 = sphi 0, %s90
    %s107 = sphi 0, %s91
  $region4: #{axial_attention_forward.2} parent=0 // loop_header_branch
    %12 = sbr.rel (%p10) target = $region8
  $region5: #{axial_attention_forward.2} parent=0 // loop_body
    %s14 = ssub.s32 %s9, 1
    %s15 = ssub.s32 %s9, 2
    %s16 = sadd.s32 %s9, 1
    %s17 = ssub.s32 %s9, %s16
    %p18 = scmp.eq.s32.totalorder %s17, 0
    %s20 = sadd.s32 %s19, 1
    %s21 = scalar_select %p18, %s19, %s20
    %p24 = pneg %p18
    %p25 = scmp.eq.s32.totalorder %s9, 2
    %p26 = por %p24, %p25
    %p27 = scmp.ne.s32.totalorder %s19, %s22
    %p28 = scmp.eq.s32.totalorder %s9, 0
    %p29 = por %p27, %p28
    %p30 = scmp.ne.s32.totalorder %s19, %s22
    %p31 = scmp.eq.s32.totalorder %s14, 2
    %p32 = por %p30, %p31
    %p33 = scmp.ne.s32.totalorder %s22, %s23
    %p34 = scmp.eq.s32.totalorder %s14, 0
    %p35 = por %p33, %p34
    %p36 = scmp.ne.s32.totalorder %s22, %s23
    %p37 = scmp.eq.s32.totalorder %s15, 2
    %p38 = por %p36, %p37
    %p40 = scmp.ne.s32.totalorder %s23, %s39
    %p41 = scmp.eq.s32.totalorder %s15, 0
    %p42 = por %p40, %p41
    %s44 = sadd.s32 %s43, 1
    %p47 = scmp.eq.s32.totalorder %s9, 2
    %p48 = scmp.ne.s32.totalorder %s43, %s45
    %p49 = scmp.eq.s32.totalorder %s9, 0
    %p50 = por %p48, %p49
    %p51 = scmp.ne.s32.totalorder %s43, %s45
    %p52 = scmp.eq.s32.totalorder %s14, 2
    %p53 = por %p51, %p52
    %p54 = scmp.ne.s32.totalorder %s45, %s46
    %p55 = scmp.eq.s32.totalorder %s14, 0
    %p56 = por %p54, %p55
    %p57 = scmp.ne.s32.totalorder %s45, %s46
    %p58 = scmp.eq.s32.totalorder %s15, 2
    %p59 = por %p57, %p58
    %p61 = scmp.ne.s32.totalorder %s46, %s60
    %p62 = scmp.eq.s32.totalorder %s15, 0
    %p63 = por %p61, %p62
    %s65 = sadd.s32 %s64, 1
    %p68 = scmp.eq.s32.totalorder %s9, 2
    %p69 = scmp.ne.s32.totalorder %s64, %s66
    %p70 = scmp.eq.s32.totalorder %s9, 0
    %p71 = por %p69, %p70
    %p72 = scmp.ne.s32.totalorder %s64, %s66
    %p73 = scmp.eq.s32.totalorder %s14, 2
    %p74 = por %p72, %p73
    %p75 = scmp.ne.s32.totalorder %s66, %s67
    %p76 = scmp.eq.s32.totalorder %s14, 0
    %p77 = por %p75, %p76
    %p78 = scmp.ne.s32.totalorder %s66, %s67
    %p79 = scmp.eq.s32.totalorder %s15, 2
    %p80 = por %p78, %p79
    %p82 = scmp.ne.s32.totalorder %s67, %s81
    %p83 = scmp.eq.s32.totalorder %s15, 0
    %p84 = por %p82, %p83
    %s85 = ssub.s32 %s9, %s16
    %p86 = scmp.eq.s32.totalorder %s85, 0
    %s88 = sadd.s32 %s87, 1
    %s89 = scalar_select %p86, %s87, %s88
    %p92 = pneg %p86
    %p93 = scmp.eq.s32.totalorder %s9, 2
    %p94 = por %p92, %p93
    %p95 = scmp.ne.s32.totalorder %s87, %s90
    %p96 = scmp.eq.s32.totalorder %s9, 0
    %p97 = por %p95, %p96
    %p98 = scmp.ne.s32.totalorder %s87, %s90
    %p99 = scmp.eq.s32.totalorder %s14, 2
    %p100 = por %p98, %p99
    %p101 = scmp.ne.s32.totalorder %s90, %s91
    %p102 = scmp.eq.s32.totalorder %s14, 0
    %p103 = por %p101, %p102
    %p104 = scmp.ne.s32.totalorder %s90, %s91
    %p105 = scmp.eq.s32.totalorder %s15, 2
    %p106 = por %p104, %p105
    %p108 = scmp.ne.s32.totalorder %s91, %s107
    %p109 = scmp.eq.s32.totalorder %s15, 0
    %p110 = por %p108, %p109
    %p111 = scmp.le.s32.totalorder 1, %s9
    %p112 = scmp.lt.s32.totalorder %s9, 4
    %p113 = pnand %p111, %p112
    %p114 = pneg %p113
    // Predicated region
    $region9: #{axial_attention_forward.2} parent=5 // pred_check
      _
    $region10: #{axial_attention_forward.2} parent=5 // pred_check_branch
      %116 = sbr.rel (%p113) target = $region12
    $region11: #{axial_attention_forward.2} parent=5 // pred_region
      %s117 = ssub.s32 %s9, 1
      // Predicated region
      $region13: #{axial_attention_forward.2} parent=11 // pred_check
        %p118 = pneg %p56
      $region14: #{axial_attention_forward.2} parent=11 // pred_check_branch
        %120 = sbr.rel (%p118) target = $region16
      $region15: #{axial_attention_forward.2} parent=11 // pred_region
        _
      $region16: #{axial_attention_forward.2} parent=11 // pred_fallthru
        _
      // Predicated region
      $region17: #{axial_attention_forward.2} parent=11 // pred_check
        %p121 = pneg %p77
      $region18: #{axial_attention_forward.2} parent=11 // pred_check_branch
        %123 = sbr.rel (%p121) target = $region20
      $region19: #{axial_attention_forward.2} parent=11 // pred_region
        _
      $region20: #{axial_attention_forward.2} parent=11 // pred_fallthru
        _
    $region12: #{axial_attention_forward.2} parent=5 // pred_fallthru
      _
    %p124 = scmp.lt.s32.totalorder %s9, 3
    // Predicated region
    $region21: #{axial_attention_forward.2} parent=5 // pred_check
      %p125 = pneg %p124
    $region22: #{axial_attention_forward.2} parent=5 // pred_check_branch
      %127 = sbr.rel (%p125) target = $region24
    $region23: #{axial_attention_forward.2} parent=5 // pred_region
      // Predicated region
      $region25: #{axial_attention_forward.2} parent=23 // pred_check
        %p128 = pneg %p29
      $region26: #{axial_attention_forward.2} parent=23 // pred_check_branch
        %130 = sbr.rel (%p128) target = $region28
      $region27: #{axial_attention_forward.2} parent=23 // pred_region
        %s131 = smul.u32 32, %s9
        %p132 = scmp.lt.s32.totalorder %s131, 95
        %s133 = scalar_select %p132, %s131, 95
        %s134 = smul.addr %s133, 8
        %s135 = scalar_lea.vmem %s0, %s134
        %s136 = smul.u32 32, %s9
      $region28: #{axial_attention_forward.2} parent=23 // pred_fallthru
        _
    $region24: #{axial_attention_forward.2} parent=5 // pred_fallthru
      _
    %p137 = scmp.le.s32.totalorder 1, %s9
    %p138 = scmp.lt.s32.totalorder %s9, 4
    %p139 = pnand %p137, %p138
    %p140 = pneg %p139
    // Predicated region
    $region29: #{axial_attention_forward.2} parent=5 // pred_check
      _
    $region30: #{axial_attention_forward.2} parent=5 // pred_check_branch
      %142 = sbr.rel (%p139) target = $region32
    $region31: #{axial_attention_forward.2} parent=5 // pred_region
      %s143 = ssub.s32 %s9, 1
      %s144 = smul.u32 32, %s14
      %p145 = scmp.lt.s32.totalorder %s144, 95
      %s146 = scalar_select %p145, %s144, 95
      %s147 = smul.addr %s146, 8
      %s148 = scalar_lea.vmem %s0, %s147
      %p149 = pneg %p35
      %p150 = pneg %p32
      %p151 = pneg %p56
      %p152 = pneg %p53
      %p153 = pneg %p77
      %p154 = pneg %p74
      %p155 = pneg %p103
      %p156 = pneg %p100
      %s157 = smul.u32 32, %s14
      %p158 = scmp.lt.s32.totalorder %s157, 95
      %s159 = scalar_select %p158, %s157, 95
      %s160 = smul.addr %s159, 8
      %s161 = scalar_lea.vmem %s3, %s160
      %s162 = smul.u32 32, %s14
      %p163 = scmp.lt.s32.totalorder %s162, 95
      %s164 = scalar_select %p163, %s162, 95
      %s165 = smul.addr %s164, 8
      %s166 = scalar_lea.vmem %s0, %s165
      %s167 = smul.u32 32, %s14
      %s168 = smul.u32 32, %s14
      %p169 = scmp.lt.s32.totalorder %s168, 95
      %s170 = scalar_select %p169, %s168, 95
      %s171 = smul.addr %s170, 8
      %s172 = scalar_lea.vmem %s3, %s171
      %s173 = smul.u32 32, %s14
      %v174 = vld [vmem:[%s166] sm:$0xff]
      %v175 = vld [vmem:[%s166 + $0x8] sm:$0xff]
      %v176 = vld [vmem:[%s166 + $0x10] sm:$0xff]
      %v177 = vld [vmem:[%s166 + $0x18] sm:$0xff]
      %v178 = vld [vmem:[%s166 + $0x20] sm:$0xff]
      %v179 = vld [vmem:[%s166 + $0x28] sm:$0xff]
      %v180 = vld [vmem:[%s166 + $0x30] sm:$0xff]
      %v181 = vld [vmem:[%s166 + $0x38] sm:$0xff]
      %v182 = vld [vmem:[%s166 + $0x40] sm:$0xff]
      %v183 = vld [vmem:[%s166 + $0x48] sm:$0xff]
      %v184 = vld [vmem:[%s166 + $0x50] sm:$0xff]
      %v185 = vld [vmem:[%s166 + $0x58] sm:$0xff]
      %v186 = vld [vmem:[%s166 + $0x60] sm:$0xff]
      %v187 = vld [vmem:[%s166 + $0x68] sm:$0xff]
      %v188 = vld [vmem:[%s166 + $0x70] sm:$0xff]
      %v189 = vld [vmem:[%s166 + $0x78] sm:$0xff]
      %v190 = vld [vmem:[%s166 + $0x80] sm:$0xff]
      %v191 = vld [vmem:[%s166 + $0x88] sm:$0xff]
      %v192 = vld [vmem:[%s166 + $0x90] sm:$0xff]
      %v193 = vld [vmem:[%s166 + $0x98] sm:$0xff]
      %v194 = vld [vmem:[%s166 + $0xa0] sm:$0xff]
      %v195 = vld [vmem:[%s166 + $0xa8] sm:$0xff]
      %v196 = vld [vmem:[%s166 + $0xb0] sm:$0xff]
      %v197 = vld [vmem:[%s166 + $0xb8] sm:$0xff]
      %v198 = vld [vmem:[%s166 + $0xc0] sm:$0xff]
      %v199 = vld [vmem:[%s166 + $0xc8] sm:$0xff]
      %v200 = vld [vmem:[%s166 + $0xd0] sm:$0xff]
      %v201 = vld [vmem:[%s166 + $0xd8] sm:$0xff]
      %v202 = vld [vmem:[%s166 + $0xe0] sm:$0xff]
      %v203 = vld [vmem:[%s166 + $0xe8] sm:$0xff]
      %v204 = vld [vmem:[%s166 + $0xf0] sm:$0xff]
      %v205 = vld [vmem:[%s166 + $0xf8] sm:$0xff]
      %v206 = vld [vmem:[%s1] sm:$0xff]
      %v207 = vld [vmem:[%s1 + $0x8] sm:$0xff]
      %v208 = vld [vmem:[%s2] sm:$0x1]
      %v210 = vperm.slane %v208, 0
      %vm212 = vcmask 130048
      %v214 = vsel %vm212, %v174, 0
      %v217 = vsel %vm212, %v175, 0
      %v220 = vsel %vm212, %v176, 0
      %v223 = vsel %vm212, %v177, 0
      %v226 = vsel %vm212, %v178, 0
      %v229 = vsel %vm212, %v179, 0
      %v232 = vsel %vm212, %v180, 0
      %v235 = vsel %vm212, %v181, 0
      %v238 = vsel %vm212, %v182, 0
      %v241 = vsel %vm212, %v183, 0
      %v244 = vsel %vm212, %v184, 0
      %v247 = vsel %vm212, %v185, 0
      %v250 = vsel %vm212, %v186, 0
      %v253 = vsel %vm212, %v187, 0
      %v256 = vsel %vm212, %v188, 0
      %v259 = vsel %vm212, %v189, 0
      %v262 = vsel %vm212, %v190, 0
      %v265 = vsel %vm212, %v191, 0
      %v268 = vsel %vm212, %v192, 0
      %v271 = vsel %vm212, %v193, 0
      %v274 = vsel %vm212, %v194, 0
      %v277 = vsel %vm212, %v195, 0
      %v280 = vsel %vm212, %v196, 0
      %v283 = vsel %vm212, %v197, 0
      %v286 = vsel %vm212, %v198, 0
      %v289 = vsel %vm212, %v199, 0
      %v292 = vsel %vm212, %v200, 0
      %v295 = vsel %vm212, %v201, 0
      %v298 = vsel %vm212, %v202, 0
      %v301 = vsel %vm212, %v203, 0
      %v304 = vsel %vm212, %v204, 0
      %v307 = vsel %vm212, %v205, 0
      %309 = vmatpush.msra.mxu0 0.0
      %310 = vmatpush.msra.mxu0 0.0
      %311 = vmatpush.msra.mxu0 0.0
      %312 = vmatpush.msra.mxu0 0.0
      %313 = vmatpush.msra.mxu0 0.0
      %314 = vmatpush.msra.mxu0 0.0
      %315 = vmatpush.msra.mxu0 0.0
      %316 = vmatpush.msra.mxu0 0.0
      %317 = vmatpush.msra.mxu0 0.0
      %318 = vmatpush.msra.mxu0 0.0
      %319 = vmatpush.msra.mxu0 0.0
      %320 = vmatpush.msra.mxu0 0.0
      %321 = vmatpush.msra.mxu0 0.0
      %322 = vmatpush.msra.mxu0 0.0
      %323 = vmatpush.msra.mxu0 %v207
      %324 = vmatpush.msra.mxu0 %v206
      %325 = vmatmul.f32.gmra.mxu0 %v214
      %v326 = vpop.f32.mrf.mxu0
      %v327 = vadd.f32 %v210, %v326
      %328 = vmatmul.f32.gmra.mxu0 %v217
      %v329 = vpop.f32.mrf.mxu0
      %v330 = vadd.f32 %v210, %v329
      %331 = vmatmul.f32.gmra.mxu0 %v220
      %v332 = vpop.f32.mrf.mxu0
      %v333 = vadd.f32 %v210, %v332
      %334 = vmatmul.f32.gmra.mxu0 %v223
      %v335 = vpop.f32.mrf.mxu0
      %v336 = vadd.f32 %v210, %v335
      %337 = vmatmul.f32.gmra.mxu0 %v226
      %v338 = vpop.f32.mrf.mxu0
      %v339 = vadd.f32 %v210, %v338
      %340 = vmatmul.f32.gmra.mxu0 %v229
      %v341 = vpop.f32.mrf.mxu0
      %v342 = vadd.f32 %v210, %v341
      %343 = vmatmul.f32.gmra.mxu0 %v232
      %v344 = vpop.f32.mrf.mxu0
      %v345 = vadd.f32 %v210, %v344
      %346 = vmatmul.f32.gmra.mxu0 %v235
      %v347 = vpop.f32.mrf.mxu0
      %v348 = vadd.f32 %v210, %v347
      %349 = vmatmul.f32.gmra.mxu0 %v238
      %v350 = vpop.f32.mrf.mxu0
      %v351 = vadd.f32 %v210, %v350
      %352 = vmatmul.f32.gmra.mxu0 %v241
      %v353 = vpop.f32.mrf.mxu0
      %v354 = vadd.f32 %v210, %v353
      %355 = vmatmul.f32.gmra.mxu0 %v244
      %v356 = vpop.f32.mrf.mxu0
      %v357 = vadd.f32 %v210, %v356
      %358 = vmatmul.f32.gmra.mxu0 %v247
      %v359 = vpop.f32.mrf.mxu0
      %v360 = vadd.f32 %v210, %v359
      %361 = vmatmul.f32.gmra.mxu0 %v250
      %v362 = vpop.f32.mrf.mxu0
      %v363 = vadd.f32 %v210, %v362
      %364 = vmatmul.f32.gmra.mxu0 %v253
      %v365 = vpop.f32.mrf.mxu0
      %v366 = vadd.f32 %v210, %v365
      %367 = vmatmul.f32.gmra.mxu0 %v256
      %v368 = vpop.f32.mrf.mxu0
      %v369 = vadd.f32 %v210, %v368
      %370 = vmatmul.f32.gmra.mxu0 %v259
      %v371 = vpop.f32.mrf.mxu0
      %v372 = vadd.f32 %v210, %v371
      %373 = vmatmul.f32.gmra.mxu0 %v262
      %v374 = vpop.f32.mrf.mxu0
      %v375 = vadd.f32 %v210, %v374
      %376 = vmatmul.f32.gmra.mxu0 %v265
      %v377 = vpop.f32.mrf.mxu0
      %v378 = vadd.f32 %v210, %v377
      %379 = vmatmul.f32.gmra.mxu0 %v268
      %v380 = vpop.f32.mrf.mxu0
      %v381 = vadd.f32 %v210, %v380
      %382 = vmatmul.f32.gmra.mxu0 %v271
      %v383 = vpop.f32.mrf.mxu0
      %v384 = vadd.f32 %v210, %v383
      %385 = vmatmul.f32.gmra.mxu0 %v274
      %v386 = vpop.f32.mrf.mxu0
      %v387 = vadd.f32 %v210, %v386
      %388 = vmatmul.f32.gmra.mxu0 %v277
      %v389 = vpop.f32.mrf.mxu0
      %v390 = vadd.f32 %v210, %v389
      %391 = vmatmul.f32.gmra.mxu0 %v280
      %v392 = vpop.f32.mrf.mxu0
      %v393 = vadd.f32 %v210, %v392
      %394 = vmatmul.f32.gmra.mxu0 %v283
      %v395 = vpop.f32.mrf.mxu0
      %v396 = vadd.f32 %v210, %v395
      %397 = vmatmul.f32.gmra.mxu0 %v286
      %v398 = vpop.f32.mrf.mxu0
      %v399 = vadd.f32 %v210, %v398
      %400 = vmatmul.f32.gmra.mxu0 %v289
      %v401 = vpop.f32.mrf.mxu0
      %v402 = vadd.f32 %v210, %v401
      %403 = vmatmul.f32.gmra.mxu0 %v292
      %v404 = vpop.f32.mrf.mxu0
      %v405 = vadd.f32 %v210, %v404
      %406 = vmatmul.f32.gmra.mxu0 %v295
      %v407 = vpop.f32.mrf.mxu0
      %v408 = vadd.f32 %v210, %v407
      %409 = vmatmul.f32.gmra.mxu0 %v298
      %v410 = vpop.f32.mrf.mxu0
      %v411 = vadd.f32 %v210, %v410
      %412 = vmatmul.f32.gmra.mxu0 %v301
      %v413 = vpop.f32.mrf.mxu0
      %v414 = vadd.f32 %v210, %v413
      %415 = vmatmul.f32.gmra.mxu0 %v304
      %v416 = vpop.f32.mrf.mxu0
      %v417 = vadd.f32 %v210, %v416
      %418 = vmatmul.f32.gmra.mxu0 %v307
      %v419 = vpop.f32.mrf.mxu0
      %v420 = vadd.f32 %v210, %v419
      %421 = vdwg.mxu0
      %vm422 = vcmask 523264
      %423 = vst.msk [vmem:[%s172] sm:$0xff] %vm422, %v327
      %424 = vst.msk [vmem:[%s172 + $0x8] sm:$0xff] %vm422, %v330
      %425 = vst.msk [vmem:[%s172 + $0x10] sm:$0xff] %vm422, %v333
      %426 = vst.msk [vmem:[%s172 + $0x18] sm:$0xff] %vm422, %v336
      %427 = vst.msk [vmem:[%s172 + $0x20] sm:$0xff] %vm422, %v339
      %428 = vst.msk [vmem:[%s172 + $0x28] sm:$0xff] %vm422, %v342
      %429 = vst.msk [vmem:[%s172 + $0x30] sm:$0xff] %vm422, %v345
      %430 = vst.msk [vmem:[%s172 + $0x38] sm:$0xff] %vm422, %v348
      %431 = vst.msk [vmem:[%s172 + $0x40] sm:$0xff] %vm422, %v351
      %432 = vst.msk [vmem:[%s172 + $0x48] sm:$0xff] %vm422, %v354
      %433 = vst.msk [vmem:[%s172 + $0x50] sm:$0xff] %vm422, %v357
      %434 = vst.msk [vmem:[%s172 + $0x58] sm:$0xff] %vm422, %v360
      %435 = vst.msk [vmem:[%s172 + $0x60] sm:$0xff] %vm422, %v363
      %436 = vst.msk [vmem:[%s172 + $0x68] sm:$0xff] %vm422, %v366
      %437 = vst.msk [vmem:[%s172 + $0x70] sm:$0xff] %vm422, %v369
      %438 = vst.msk [vmem:[%s172 + $0x78] sm:$0xff] %vm422, %v372
      %439 = vst.msk [vmem:[%s172 + $0x80] sm:$0xff] %vm422, %v375
      %440 = vst.msk [vmem:[%s172 + $0x88] sm:$0xff] %vm422, %v378
      %441 = vst.msk [vmem:[%s172 + $0x90] sm:$0xff] %vm422, %v381
      %442 = vst.msk [vmem:[%s172 + $0x98] sm:$0xff] %vm422, %v384
      %443 = vst.msk [vmem:[%s172 + $0xa0] sm:$0xff] %vm422, %v387
      %444 = vst.msk [vmem:[%s172 + $0xa8] sm:$0xff] %vm422, %v390
      %445 = vst.msk [vmem:[%s172 + $0xb0] sm:$0xff] %vm422, %v393
      %446 = vst.msk [vmem:[%s172 + $0xb8] sm:$0xff] %vm422, %v396
      %447 = vst.msk [vmem:[%s172 + $0xc0] sm:$0xff] %vm422, %v399
      %448 = vst.msk [vmem:[%s172 + $0xc8] sm:$0xff] %vm422, %v402
      %449 = vst.msk [vmem:[%s172 + $0xd0] sm:$0xff] %vm422, %v405
      %450 = vst.msk [vmem:[%s172 + $0xd8] sm:$0xff] %vm422, %v408
      %451 = vst.msk [vmem:[%s172 + $0xe0] sm:$0xff] %vm422, %v411
      %452 = vst.msk [vmem:[%s172 + $0xe8] sm:$0xff] %vm422, %v414
      %453 = vst.msk [vmem:[%s172 + $0xf0] sm:$0xff] %vm422, %v417
      %454 = vst.msk [vmem:[%s172 + $0xf8] sm:$0xff] %vm422, %v420
      %s455 = smul.u32 32, %s14
      %p456 = scmp.lt.s32.totalorder %s455, 95
      %s457 = scalar_select %p456, %s455, 95
      %s458 = smul.addr %s457, 8
      %s459 = scalar_lea.vmem %s3, %s458
      // Predicated region
      $region33: #{axial_attention_forward.2} parent=31 // pred_check
        %p460 = pneg %p100
      $region34: #{axial_attention_forward.2} parent=31 // pred_check_branch
        %462 = sbr.rel (%p460) target = $region36
      $region35: #{axial_attention_forward.2} parent=31 // pred_region
        %s463 = smul.u32 32, %s14
      $region36: #{axial_attention_forward.2} parent=31 // pred_fallthru
        _
    $region32: #{axial_attention_forward.2} parent=5 // pred_fallthru
      _
    %p464 = scmp.le.s32.totalorder 2, %s9
    // Predicated region
    $region37: #{axial_attention_forward.2} parent=5 // pred_check
      %p465 = pneg %p464
    $region38: #{axial_attention_forward.2} parent=5 // pred_check_branch
      %467 = sbr.rel (%p465) target = $region40
    $region39: #{axial_attention_forward.2} parent=5 // pred_region
      %s468 = ssub.s32 %s9, 2
      // Predicated region
      $region41: #{axial_attention_forward.2} parent=39 // pred_check
        %p469 = pneg %p106
      $region42: #{axial_attention_forward.2} parent=39 // pred_check_branch
        %471 = sbr.rel (%p469) target = $region44
      $region43: #{axial_attention_forward.2} parent=39 // pred_region
        %s472 = smul.u32 32, %s15
        %p473 = scmp.lt.s32.totalorder %s472, 95
        %s474 = scalar_select %p473, %s472, 95
        %s475 = smul.addr %s474, 8
        %s476 = scalar_lea.vmem %s3, %s475
      $region44: #{axial_attention_forward.2} parent=39 // pred_fallthru
        _
    $region40: #{axial_attention_forward.2} parent=5 // pred_fallthru
      _
  $region6: #{axial_attention_forward.2} parent=0 // loop_footer
    %s13 = sadd.s32 1, %s9
  $region7: #{axial_attention_forward.2} parent=0 // loop_footer_branch
    %8 = sbr.rel target = $region3
  $region8: #{axial_attention_forward.2} parent=0 // loop_exit
    _

// kernel: axial_attention_forward.3
$region0: #{axial_attention_forward.3}
  #allocation0 [shape = 'u32[]', space=smem, size = 0x4, offset = 0x4, fixed_abs, tag = 'smem constant byte address 0x4 - core index']
  #allocation1 [shape = 'u32[72,128]{1,0:T(1,128)}', space=vmem, size = 0x9000, scoped, tag = 'internal scratch']
  %s0 = inlined_call_operand.vmem [shape: f32[32,4,24,4], index: 0, kind: input, shape index: {}]
  %s1 = inlined_call_operand.vmem [shape: f32[32,4,24,4], index: 1, kind: input, shape index: {}]
  %s2 = inlined_call_operand.vmem [shape: f32[32,4,24,8], index: 2, kind: input, shape index: {}]
  %s3 = inlined_call_operand.vmem [shape: f32[4,1,8], index: 3, kind: input, shape index: {}]
  %s4 = inlined_call_operand.vmem [shape: f32[4,1,8], index: 4, kind: input, shape index: {}]
  %s5 = inlined_call_operand.vmem [shape: f32[32,4,24,8], index: 5, kind: output, shape index: {}]
  %s6 = sld [smem:[#allocation0]]
  $region53: #{axial_attention_forward.3} parent=0
    _
  %s8 = ssub.s32 1, %s6
  %s9 = scalar_select 0, %s8, %s6
  loop: start=0, step=1, limit=34
  $region2: #{axial_attention_forward.3} parent=0 // loop_pre_header
    _
  $region3: #{axial_attention_forward.3} parent=0 // loop_header
    %s11 = sphi 0, %s15
    %p12 = scmp.ge.s32.totalorder %s11, 34
    %s21 = sphi 0, %s23
    %s24 = sphi 0, %s21
    %s25 = sphi 0, %s24
    %s41 = sphi 0, %s25
    %s47 = sphi 0, %s49
    %s50 = sphi 0, %s47
    %s51 = sphi 0, %s50
    %s67 = sphi 0, %s51
    %s73 = sphi 0, %s75
    %s76 = sphi 0, %s73
    %s77 = sphi 0, %s76
    %s93 = sphi 0, %s77
    %s97 = sphi 0, %s97
    %s99 = sphi 0, %s97
    %s100 = sphi 0, %s99
    %s114 = sphi 0, %s100
    %s118 = sphi 0, %s118
    %s120 = sphi 0, %s118
    %s121 = sphi 0, %s120
    %s135 = sphi 0, %s121
    %s141 = sphi 0, %s143
    %s144 = sphi 0, %s141
    %s145 = sphi 0, %s144
    %s161 = sphi 0, %s145
  $region4: #{axial_attention_forward.3} parent=0 // loop_header_branch
    %14 = sbr.rel (%p12) target = $region8
  $region5: #{axial_attention_forward.3} parent=0 // loop_body
    %s16 = ssub.s32 %s11, 1
    %s17 = ssub.s32 %s11, 2
    %s18 = sadd.s32 %s11, 1
    %s19 = ssub.s32 %s11, %s18
    %p20 = scmp.eq.s32.totalorder %s19, 0
    %s22 = sadd.s32 %s21, 1
    %s23 = scalar_select %p20, %s21, %s22
    %p26 = pneg %p20
    %p27 = scmp.eq.s32.totalorder %s11, 31
    %p28 = por %p26, %p27
    %p29 = scmp.ne.s32.totalorder %s21, %s24
    %p30 = scmp.eq.s32.totalorder %s11, 0
    %p31 = por %p29, %p30
    %p32 = scmp.ne.s32.totalorder %s21, %s24
    %p33 = scmp.eq.s32.totalorder %s16, 31
    %p34 = por %p32, %p33
    %p35 = scmp.ne.s32.totalorder %s24, %s25
    %p36 = scmp.eq.s32.totalorder %s16, 0
    %p37 = por %p35, %p36
    %p38 = scmp.ne.s32.totalorder %s24, %s25
    %p39 = scmp.eq.s32.totalorder %s17, 31
    %p40 = por %p38, %p39
    %p42 = scmp.ne.s32.totalorder %s25, %s41
    %p43 = scmp.eq.s32.totalorder %s17, 0
    %p44 = por %p42, %p43
    %s45 = ssub.s32 %s11, %s18
    %p46 = scmp.eq.s32.totalorder %s45, 0
    %s48 = sadd.s32 %s47, 1
    %s49 = scalar_select %p46, %s47, %s48
    %p52 = pneg %p46
    %p53 = scmp.eq.s32.totalorder %s11, 31
    %p54 = por %p52, %p53
    %p55 = scmp.ne.s32.totalorder %s47, %s50
    %p56 = scmp.eq.s32.totalorder %s11, 0
    %p57 = por %p55, %p56
    %p58 = scmp.ne.s32.totalorder %s47, %s50
    %p59 = scmp.eq.s32.totalorder %s16, 31
    %p60 = por %p58, %p59
    %p61 = scmp.ne.s32.totalorder %s50, %s51
    %p62 = scmp.eq.s32.totalorder %s16, 0
    %p63 = por %p61, %p62
    %p64 = scmp.ne.s32.totalorder %s50, %s51
    %p65 = scmp.eq.s32.totalorder %s17, 31
    %p66 = por %p64, %p65
    %p68 = scmp.ne.s32.totalorder %s51, %s67
    %p69 = scmp.eq.s32.totalorder %s17, 0
    %p70 = por %p68, %p69
    %s71 = ssub.s32 %s11, %s18
    %p72 = scmp.eq.s32.totalorder %s71, 0
    %s74 = sadd.s32 %s73, 1
    %s75 = scalar_select %p72, %s73, %s74
    %p78 = pneg %p72
    %p79 = scmp.eq.s32.totalorder %s11, 31
    %p80 = por %p78, %p79
    %p81 = scmp.ne.s32.totalorder %s73, %s76
    %p82 = scmp.eq.s32.totalorder %s11, 0
    %p83 = por %p81, %p82
    %p84 = scmp.ne.s32.totalorder %s73, %s76
    %p85 = scmp.eq.s32.totalorder %s16, 31
    %p86 = por %p84, %p85
    %p87 = scmp.ne.s32.totalorder %s76, %s77
    %p88 = scmp.eq.s32.totalorder %s16, 0
    %p89 = por %p87, %p88
    %p90 = scmp.ne.s32.totalorder %s76, %s77
    %p91 = scmp.eq.s32.totalorder %s17, 31
    %p92 = por %p90, %p91
    %p94 = scmp.ne.s32.totalorder %s77, %s93
    %p95 = scmp.eq.s32.totalorder %s17, 0
    %p96 = por %p94, %p95
    %s98 = sadd.s32 %s97, 1
    %p101 = scmp.eq.s32.totalorder %s11, 31
    %p102 = scmp.ne.s32.totalorder %s97, %s99
    %p103 = scmp.eq.s32.totalorder %s11, 0
    %p104 = por %p102, %p103
    %p105 = scmp.ne.s32.totalorder %s97, %s99
    %p106 = scmp.eq.s32.totalorder %s16, 31
    %p107 = por %p105, %p106
    %p108 = scmp.ne.s32.totalorder %s99, %s100
    %p109 = scmp.eq.s32.totalorder %s16, 0
    %p110 = por %p108, %p109
    %p111 = scmp.ne.s32.totalorder %s99, %s100
    %p112 = scmp.eq.s32.totalorder %s17, 31
    %p113 = por %p111, %p112
    %p115 = scmp.ne.s32.totalorder %s100, %s114
    %p116 = scmp.eq.s32.totalorder %s17, 0
    %p117 = por %p115, %p116
    %s119 = sadd.s32 %s118, 1
    %p122 = scmp.eq.s32.totalorder %s11, 31
    %p123 = scmp.ne.s32.totalorder %s118, %s120
    %p124 = scmp.eq.s32.totalorder %s11, 0
    %p125 = por %p123, %p124
    %p126 = scmp.ne.s32.totalorder %s118, %s120
    %p127 = scmp.eq.s32.totalorder %s16, 31
    %p128 = por %p126, %p127
    %p129 = scmp.ne.s32.totalorder %s120, %s121
    %p130 = scmp.eq.s32.totalorder %s16, 0
    %p131 = por %p129, %p130
    %p132 = scmp.ne.s32.totalorder %s120, %s121
    %p133 = scmp.eq.s32.totalorder %s17, 31
    %p134 = por %p132, %p133
    %p136 = scmp.ne.s32.totalorder %s121, %s135
    %p137 = scmp.eq.s32.totalorder %s17, 0
    %p138 = por %p136, %p137
    %s139 = ssub.s32 %s11, %s18
    %p140 = scmp.eq.s32.totalorder %s139, 0
    %s142 = sadd.s32 %s141, 1
    %s143 = scalar_select %p140, %s141, %s142
    %p146 = pneg %p140
    %p147 = scmp.eq.s32.totalorder %s11, 31
    %p148 = por %p146, %p147
    %p149 = scmp.ne.s32.totalorder %s141, %s144
    %p150 = scmp.eq.s32.totalorder %s11, 0
    %p151 = por %p149, %p150
    %p152 = scmp.ne.s32.totalorder %s141, %s144
    %p153 = scmp.eq.s32.totalorder %s16, 31
    %p154 = por %p152, %p153
    %p155 = scmp.ne.s32.totalorder %s144, %s145
    %p156 = scmp.eq.s32.totalorder %s16, 0
    %p157 = por %p155, %p156
    %p158 = scmp.ne.s32.totalorder %s144, %s145
    %p159 = scmp.eq.s32.totalorder %s17, 31
    %p160 = por %p158, %p159
    %p162 = scmp.ne.s32.totalorder %s145, %s161
    %p163 = scmp.eq.s32.totalorder %s17, 0
    %p164 = por %p162, %p163
    %p165 = scmp.le.s32.totalorder 1, %s11
    %p166 = scmp.lt.s32.totalorder %s11, 33
    %p167 = pnand %p165, %p166
    %p168 = pneg %p167
    // Predicated region
    $region9: #{axial_attention_forward.3} parent=5 // pred_check
      _
    $region10: #{axial_attention_forward.3} parent=5 // pred_check_branch
      %170 = sbr.rel (%p167) target = $region12
    $region11: #{axial_attention_forward.3} parent=5 // pred_region
      %s171 = ssub.s32 %s11, 1
      // Predicated region
      $region13: #{axial_attention_forward.3} parent=11 // pred_check
        %p172 = pneg %p110
      $region14: #{axial_attention_forward.3} parent=11 // pred_check_branch
        %174 = sbr.rel (%p172) target = $region16
      $region15: #{axial_attention_forward.3} parent=11 // pred_region
        _
      $region16: #{axial_attention_forward.3} parent=11 // pred_fallthru
        _
      // Predicated region
      $region17: #{axial_attention_forward.3} parent=11 // pred_check
        %p175 = pneg %p131
      $region18: #{axial_attention_forward.3} parent=11 // pred_check_branch
        %177 = sbr.rel (%p175) target = $region20
      $region19: #{axial_attention_forward.3} parent=11 // pred_region
        _
      $region20: #{axial_attention_forward.3} parent=11 // pred_fallthru
        _
    $region12: #{axial_attention_forward.3} parent=5 // pred_fallthru
      _
    %p178 = scmp.lt.s32.totalorder %s11, 32
    // Predicated region
    $region21: #{axial_attention_forward.3} parent=5 // pred_check
      %p179 = pneg %p178
    $region22: #{axial_attention_forward.3} parent=5 // pred_check_branch
      %181 = sbr.rel (%p179) target = $region24
    $region23: #{axial_attention_forward.3} parent=5 // pred_region
      // Predicated region
      $region25: #{axial_attention_forward.3} parent=23 // pred_check
        %p182 = pneg %p31
      $region26: #{axial_attention_forward.3} parent=23 // pred_check_branch
        %184 = sbr.rel (%p182) target = $region28
      $region27: #{axial_attention_forward.3} parent=23 // pred_region
        %p185 = scmp.lt.s32.totalorder %s11, 31
        %s186 = scalar_select %p185, %s11, 31
        %s187 = smul.addr %s186, 12
        %s188 = smul.addr %s187, 8
        %s189 = scalar_lea.vmem %s0, %s188
      $region28: #{axial_attention_forward.3} parent=23 // pred_fallthru
        _
      // Predicated region
      $region29: #{axial_attention_forward.3} parent=23 // pred_check
        %p190 = pneg %p57
      $region30: #{axial_attention_forward.3} parent=23 // pred_check_branch
        %192 = sbr.rel (%p190) target = $region32
      $region31: #{axial_attention_forward.3} parent=23 // pred_region
        %p193 = scmp.lt.s32.totalorder %s11, 31
        %s194 = scalar_select %p193, %s11, 31
        %s195 = smul.addr %s194, 12
        %s196 = smul.addr %s195, 8
        %s197 = scalar_lea.vmem %s1, %s196
      $region32: #{axial_attention_forward.3} parent=23 // pred_fallthru
        _
      // Predicated region
      $region33: #{axial_attention_forward.3} parent=23 // pred_check
        %p198 = pneg %p83
      $region34: #{axial_attention_forward.3} parent=23 // pred_check_branch
        %200 = sbr.rel (%p198) target = $region36
      $region35: #{axial_attention_forward.3} parent=23 // pred_region
        %p201 = scmp.lt.s32.totalorder %s11, 31
        %s202 = scalar_select %p201, %s11, 31
        %s203 = smul.addr %s202, 12
        %s204 = smul.addr %s203, 8
        %s205 = scalar_lea.vmem %s2, %s204
      $region36: #{axial_attention_forward.3} parent=23 // pred_fallthru
        _
    $region24: #{axial_attention_forward.3} parent=5 // pred_fallthru
      _
    %p206 = scmp.le.s32.totalorder 1, %s11
    %p207 = scmp.lt.s32.totalorder %s11, 33
    %p208 = pnand %p206, %p207
    %p209 = pneg %p208
    // Predicated region
    $region37: #{axial_attention_forward.3} parent=5 // pred_check
      _
    $region38: #{axial_attention_forward.3} parent=5 // pred_check_branch
      %211 = sbr.rel (%p208) target = $region40
    $region39: #{axial_attention_forward.3} parent=5 // pred_region
      %s212 = ssub.s32 %s11, 1
      %p213 = scmp.lt.s32.totalorder %s16, 31
      %s214 = scalar_select %p213, %s16, 31
      %s215 = smul.addr %s214, 12
      %s216 = smul.addr %s215, 8
      %s217 = scalar_lea.vmem %s0, %s216
      %p218 = pneg %p37
      %p219 = pneg %p34
      %p220 = scmp.lt.s32.totalorder %s16, 31
      %s221 = scalar_select %p220, %s16, 31
      %s222 = smul.addr %s221, 12
      %s223 = smul.addr %s222, 8
      %s224 = scalar_lea.vmem %s1, %s223
      %p225 = pneg %p63
      %p226 = pneg %p60
      %p227 = scmp.lt.s32.totalorder %s16, 31
      %s228 = scalar_select %p227, %s16, 31
      %s229 = smul.addr %s228, 12
      %s230 = smul.addr %s229, 8
      %s231 = scalar_lea.vmem %s2, %s230
      %p232 = pneg %p89
      %p233 = pneg %p86
      %p234 = pneg %p110
      %p235 = pneg %p107
      %p236 = pneg %p131
      %p237 = pneg %p128
      %p238 = pneg %p157
      %p239 = pneg %p154
      %p240 = scmp.lt.s32.totalorder %s16, 31
      %s241 = scalar_select %p240, %s16, 31
      %s242 = smul.addr %s241, 12
      %s243 = smul.addr %s242, 8
      %s244 = scalar_lea.vmem %s5, %s243
      %p245 = scmp.lt.s32.totalorder %s16, 31
      %s246 = scalar_select %p245, %s16, 31
      %s247 = smul.addr %s246, 12
      %s248 = smul.addr %s247, 8
      %s249 = scalar_lea.vmem %s0, %s248
      %p250 = scmp.lt.s32.totalorder %s16, 31
      %s251 = scalar_select %p250, %s16, 31
      %s252 = smul.addr %s251, 12
      %s253 = smul.addr %s252, 8
      %s254 = scalar_lea.vmem %s1, %s253
      %p255 = scmp.lt.s32.totalorder %s16, 31
      %s256 = scalar_select %p255, %s16, 31
      %s257 = smul.addr %s256, 12
      %s258 = smul.addr %s257, 8
      %s259 = scalar_lea.vmem %s2, %s258
      %p260 = scmp.lt.s32.totalorder %s16, 31
      %s261 = scalar_select %p260, %s16, 31
      %s262 = smul.addr %s261, 12
      %s263 = smul.addr %s262, 8
      %s264 = scalar_lea.vmem %s5, %s263
      %v265 = vld [vmem:[%s249] sm:$0xff]
      %v266 = vld [vmem:[%s249 + $0x8] sm:$0xff]
      %v267 = vld [vmem:[%s249 + $0x10] sm:$0xff]
      %v268 = vld [vmem:[%s254] sm:$0xff]
      %v269 = vld [vmem:[%s254 + $0x8] sm:$0xff]
      %v270 = vld [vmem:[%s254 + $0x10] sm:$0xff]
      %v271 = vld [vmem:[%s259] sm:$0xff]
      %v272 = vld [vmem:[%s259 + $0x8] sm:$0xff]
      %v273 = vld [vmem:[%s259 + $0x10] sm:$0xff]
      %vm274 = vcmask 31744
      %v276 = vsel %vm274, %v265, 0
      %v279 = vsel %vm274, %v266, 0
      %v282 = vsel %vm274, %v267, 0
      %v285 = vsel %vm274, %v268, 0
      %v288 = vsel %vm274, %v269, 0
      %v291 = vsel %vm274, %v270, 0
      %293 = vmatpush.xpose.msra.mxu0 0.0
      %294 = vmatpush.xpose.msra.mxu0 0.0
      %295 = vmatpush.xpose.msra.mxu0 0.0
      %296 = vmatpush.xpose.msra.mxu0 0.0
      %297 = vmatpush.xpose.msra.mxu0 0.0
      %298 = vmatpush.xpose.msra.mxu0 0.0
      %299 = vmatpush.xpose.msra.mxu0 0.0
      %300 = vmatpush.xpose.msra.mxu0 0.0
      %301 = vmatpush.xpose.msra.mxu0 0.0
      %302 = vmatpush.xpose.msra.mxu0 0.0
      %303 = vmatpush.xpose.msra.mxu0 0.0
      %304 = vmatpush.xpose.msra.mxu0 0.0
      %305 = vmatpush.xpose.msra.mxu0 0.0
      %306 = vmatpush.xpose.msra.mxu0 %v291
      %307 = vmatpush.xpose.msra.mxu0 %v288
      %308 = vmatpush.xpose.msra.mxu0 %v285
      %309 = vmatmul.f32.gmra.mxu0 %v276
      %v310 = vpop.f32.mrf.mxu0
      %v311 = vadd.f32 0.0, %v310
      %312 = vmatmul.f32.gmra.mxu0 %v279
      %v313 = vpop.f32.mrf.mxu0
      %v314 = vadd.f32 0.0, %v313
      %315 = vmatmul.f32.gmra.mxu0 %v282
      %v316 = vpop.f32.mrf.mxu0
      %v317 = vadd.f32 0.0, %v316
      %318 = vdwg.mxu0
      %vm319 = vcmask 195584
      %v320 = vsel %vm319, %v311, -inf
      %321 = vmax.xlane.f32.xlu0 %v320
      %v322 = vpop.xlane.xlu0 %321
      %v323 = vsel %vm319, %v314, -inf
      %324 = vmax.xlane.f32.xlu0 %v323
      %v325 = vpop.xlane.xlu0 %324
      %v326 = vsel %vm319, %v317, -inf
      %327 = vmax.xlane.f32.xlu0 %v326
      %v328 = vpop.xlane.xlu0 %327
      %v329 = vsub.f32 %v311, %v322
      %v330 = vsub.f32 %v314, %v325
      %v331 = vsub.f32 %v317, %v328
      %v332 = vmul.f32 %v329, 1.442695
      %v333 = vpow.pop %v332
      %v334 = vmul.f32 %v330, 1.442695
      %v335 = vpow.pop %v334
      %v336 = vmul.f32 %v331, 1.442695
      %v337 = vpow.pop %v336
      %v338 = vsel %vm319, %v333, 0.0
      %339 = vadd.xlane.f32.xlu0 %v338
      %v340 = vpop.xlane.xlu0 %339
      %v341 = vsel %vm319, %v335, 0.0
      %342 = vadd.xlane.f32.xlu0 %v341
      %v343 = vpop.xlane.xlu0 %342
      %v344 = vsel %vm319, %v337, 0.0
      %345 = vadd.xlane.f32.xlu0 %v344
      %v346 = vpop.xlane.xlu0 %345
      %v347 = vrcp.pop %v340
      %v348 = vrcp.pop %v343
      %v349 = vrcp.pop %v346
      %v350 = vmul.f32 %v340, %v347
      %v351 = vmul.f32 %v343, %v348
      %v352 = vmul.f32 %v346, %v349
      %v353 = vsub.f32 2.0, %v350
      %v354 = vsub.f32 2.0, %v351
      %v355 = vsub.f32 2.0, %v352
      %v356 = vmul.f32 %v347, %v353
      %v357 = vmul.f32 %v348, %v354
      %v358 = vmul.f32 %v349, %v355
      %v359 = vmul.f32 %v333, %v356
      %v360 = vmul.f32 %v335, %v357
      %v361 = vmul.f32 %v337, %v358
      %v363 = vsel %vm319, %v359, 0
      %v366 = vsel %vm319, %v360, 0
      %v369 = vsel %vm319, %v361, 0
      %371 = vmatpush.msra.mxu0 0.0
      %372 = vmatpush.msra.mxu0 0.0
      %373 = vmatpush.msra.mxu0 0.0
      %374 = vmatpush.msra.mxu0 0.0
      %375 = vmatpush.msra.mxu0 0.0
      %376 = vmatpush.msra.mxu0 0.0
      %377 = vmatpush.msra.mxu0 0.0
      %378 = vmatpush.msra.mxu0 0.0
      %379 = vmatpush.msra.mxu0 0.0
      %380 = vmatpush.msra.mxu0 0.0
      %381 = vmatpush.msra.mxu0 0.0
      %382 = vmatpush.msra.mxu0 0.0
      %383 = vmatpush.msra.mxu0 0.0
      %384 = vmatpush.msra.mxu0 %v273
      %385 = vmatpush.msra.mxu0 %v272
      %386 = vmatpush.msra.mxu0 %v271
      %387 = vmatmul.f32.gmra.mxu0 %v363
      %v388 = vpop.f32.mrf.mxu0
      %v389 = vadd.f32 0.0, %v388
      %390 = vmatmul.f32.gmra.mxu0 %v366
      %v391 = vpop.f32.mrf.mxu0
      %v392 = vadd.f32 0.0, %v391
      %393 = vmatmul.f32.gmra.mxu0 %v369
      %v394 = vpop.f32.mrf.mxu0
      %v395 = vadd.f32 0.0, %v394
      %396 = vdwg.mxu0
      %v397 = vld [vmem:[%s3] sm:$0x1]
      %v399 = vperm.slane %v397, 0
      %v401 = vmul.f32 %v389, %v399
      %v402 = vmul.f32 %v392, %v399
      %v403 = vmul.f32 %v395, %v399
      %v404 = vld [vmem:[%s4] sm:$0x1]
      %v406 = vperm.slane %v404, 0
      %v408 = vadd.f32 %v401, %v406
      %v409 = vadd.f32 %v402, %v406
      %v410 = vadd.f32 %v403, %v406
      %vm411 = vcmask 64512
      %412 = vst.msk [vmem:[%s264] sm:$0xff] %vm411, %v408
      %413 = vst.msk [vmem:[%s264 + $0x8] sm:$0xff] %vm411, %v409
      %414 = vst.msk [vmem:[%s264 + $0x10] sm:$0xff] %vm411, %v410
      %s415 = scalar_lea.vmem %s249, 24
      %v416 = vld [vmem:[%s415] sm:$0xff]
      %v417 = vld [vmem:[%s415 + $0x8] sm:$0xff]
      %v418 = vld [vmem:[%s415 + $0x10] sm:$0xff]
      %s419 = scalar_lea.vmem %s254, 24
      %v420 = vld [vmem:[%s419] sm:$0xff]
      %v421 = vld [vmem:[%s419 + $0x8] sm:$0xff]
      %v422 = vld [vmem:[%s419 + $0x10] sm:$0xff]
      %s423 = scalar_lea.vmem %s259, 24
      %v424 = vld [vmem:[%s423] sm:$0xff]
      %v425 = vld [vmem:[%s423 + $0x8] sm:$0xff]
      %v426 = vld [vmem:[%s423 + $0x10] sm:$0xff]
      %v428 = vsel %vm274, %v416, 0
      %v431 = vsel %vm274, %v417, 0
      %v434 = vsel %vm274, %v418, 0
      %v437 = vsel %vm274, %v420, 0
      %v440 = vsel %vm274, %v421, 0
      %v443 = vsel %vm274, %v422, 0
      %445 = vmatpush.xpose.msra.mxu0 0.0
      %446 = vmatpush.xpose.msra.mxu0 0.0
      %447 = vmatpush.xpose.msra.mxu0 0.0
      %448 = vmatpush.xpose.msra.mxu0 0.0
      %449 = vmatpush.xpose.msra.mxu0 0.0
      %450 = vmatpush.xpose.msra.mxu0 0.0
      %451 = vmatpush.xpose.msra.mxu0 0.0
      %452 = vmatpush.xpose.msra.mxu0 0.0
      %453 = vmatpush.xpose.msra.mxu0 0.0
      %454 = vmatpush.xpose.msra.mxu0 0.0
      %455 = vmatpush.xpose.msra.mxu0 0.0
      %456 = vmatpush.xpose.msra.mxu0 0.0
      %457 = vmatpush.xpose.msra.mxu0 0.0
      %458 = vmatpush.xpose.msra.mxu0 %v443
      %459 = vmatpush.xpose.msra.mxu0 %v440
      %460 = vmatpush.xpose.msra.mxu0 %v437
      %461 = vmatmul.f32.gmra.mxu0 %v428
      %v462 = vpop.f32.mrf.mxu0
      %v463 = vadd.f32 0.0, %v462
      %464 = vmatmul.f32.gmra.mxu0 %v431
      %v465 = vpop.f32.mrf.mxu0
      %v466 = vadd.f32 0.0, %v465
      %467 = vmatmul.f32.gmra.mxu0 %v434
      %v468 = vpop.f32.mrf.mxu0
      %v469 = vadd.f32 0.0, %v468
      %470 = vdwg.mxu0
      %v471 = vsel %vm319, %v463, -inf
      %472 = vmax.xlane.f32.xlu0 %v471
      %v473 = vpop.xlane.xlu0 %472
      %v474 = vsel %vm319, %v466, -inf
      %475 = vmax.xlane.f32.xlu0 %v474
      %v476 = vpop.xlane.xlu0 %475
      %v477 = vsel %vm319, %v469, -inf
      %478 = vmax.xlane.f32.xlu0 %v477
      %v479 = vpop.xlane.xlu0 %478
      %v480 = vsub.f32 %v463, %v473
      %v481 = vsub.f32 %v466, %v476
      %v482 = vsub.f32 %v469, %v479
      %v483 = vmul.f32 %v480, 1.442695
      %v484 = vpow.pop %v483
      %v485 = vmul.f32 %v481, 1.442695
      %v486 = vpow.pop %v485
      %v487 = vmul.f32 %v482, 1.442695
      %v488 = vpow.pop %v487
      %v489 = vsel %vm319, %v484, 0.0
      %490 = vadd.xlane.f32.xlu0 %v489
      %v491 = vpop.xlane.xlu0 %490
      %v492 = vsel %vm319, %v486, 0.0
      %493 = vadd.xlane.f32.xlu0 %v492
      %v494 = vpop.xlane.xlu0 %493
      %v495 = vsel %vm319, %v488, 0.0
      %496 = vadd.xlane.f32.xlu0 %v495
      %v497 = vpop.xlane.xlu0 %496
      %v498 = vrcp.pop %v491
      %v499 = vrcp.pop %v494
      %v500 = vrcp.pop %v497
      %v501 = vmul.f32 %v491, %v498
      %v502 = vmul.f32 %v494, %v499
      %v503 = vmul.f32 %v497, %v500
      %v504 = vsub.f32 2.0, %v501
      %v505 = vsub.f32 2.0, %v502
      %v506 = vsub.f32 2.0, %v503
      %v507 = vmul.f32 %v498, %v504
      %v508 = vmul.f32 %v499, %v505
      %v509 = vmul.f32 %v500, %v506
      %v510 = vmul.f32 %v484, %v507
      %v511 = vmul.f32 %v486, %v508
      %v512 = vmul.f32 %v488, %v509
      %v514 = vsel %vm319, %v510, 0
      %v517 = vsel %vm319, %v511, 0
      %v520 = vsel %vm319, %v512, 0
      %522 = vmatpush.msra.mxu0 0.0
      %523 = vmatpush.msra.mxu0 0.0
      %524 = vmatpush.msra.mxu0 0.0
      %525 = vmatpush.msra.mxu0 0.0
      %526 = vmatpush.msra.mxu0 0.0
      %527 = vmatpush.msra.mxu0 0.0
      %528 = vmatpush.msra.mxu0 0.0
      %529 = vmatpush.msra.mxu0 0.0
      %530 = vmatpush.msra.mxu0 0.0
      %531 = vmatpush.msra.mxu0 0.0
      %532 = vmatpush.msra.mxu0 0.0
      %533 = vmatpush.msra.mxu0 0.0
      %534 = vmatpush.msra.mxu0 0.0
      %535 = vmatpush.msra.mxu0 %v426
      %536 = vmatpush.msra.mxu0 %v425
      %537 = vmatpush.msra.mxu0 %v424
      %538 = vmatmul.f32.gmra.mxu0 %v514
      %v539 = vpop.f32.mrf.mxu0
      %v540 = vadd.f32 0.0, %v539
      %541 = vmatmul.f32.gmra.mxu0 %v517
      %v542 = vpop.f32.mrf.mxu0
      %v543 = vadd.f32 0.0, %v542
      %544 = vmatmul.f32.gmra.mxu0 %v520
      %v545 = vpop.f32.mrf.mxu0
      %v546 = vadd.f32 0.0, %v545
      %547 = vdwg.mxu0
      %s548 = scalar_lea.vmem %s3, 1
      %v549 = vld [vmem:[%s548] sm:$0x1]
      %v551 = vperm.slane %v549, 0
      %v553 = vmul.f32 %v540, %v551
      %v554 = vmul.f32 %v543, %v551
      %v555 = vmul.f32 %v546, %v551
      %s556 = scalar_lea.vmem %s4, 1
      %v557 = vld [vmem:[%s556] sm:$0x1]
      %v559 = vperm.slane %v557, 0
      %v561 = vadd.f32 %v553, %v559
      %v562 = vadd.f32 %v554, %v559
      %v563 = vadd.f32 %v555, %v559
      %s564 = scalar_lea.vmem %s264, 24
      %565 = vst.msk [vmem:[%s564] sm:$0xff] %vm411, %v561
      %566 = vst.msk [vmem:[%s564 + $0x8] sm:$0xff] %vm411, %v562
      %567 = vst.msk [vmem:[%s564 + $0x10] sm:$0xff] %vm411, %v563
      %s568 = scalar_lea.vmem %s249, 48
      %v569 = vld [vmem:[%s568] sm:$0xff]
      %v570 = vld [vmem:[%s568 + $0x8] sm:$0xff]
      %v571 = vld [vmem:[%s568 + $0x10] sm:$0xff]
      %s572 = scalar_lea.vmem %s254, 48
      %v573 = vld [vmem:[%s572] sm:$0xff]
      %v574 = vld [vmem:[%s572 + $0x8] sm:$0xff]
      %v575 = vld [vmem:[%s572 + $0x10] sm:$0xff]
      %s576 = scalar_lea.vmem %s259, 48
      %v577 = vld [vmem:[%s576] sm:$0xff]
      %v578 = vld [vmem:[%s576 + $0x8] sm:$0xff]
      %v579 = vld [vmem:[%s576 + $0x10] sm:$0xff]
      %v581 = vsel %vm274, %v569, 0
      %v584 = vsel %vm274, %v570, 0
      %v587 = vsel %vm274, %v571, 0
      %v590 = vsel %vm274, %v573, 0
      %v593 = vsel %vm274, %v574, 0
      %v596 = vsel %vm274, %v575, 0
      %598 = vmatpush.xpose.msra.mxu0 0.0
      %599 = vmatpush.xpose.msra.mxu0 0.0
      %600 = vmatpush.xpose.msra.mxu0 0.0
      %601 = vmatpush.xpose.msra.mxu0 0.0
      %602 = vmatpush.xpose.msra.mxu0 0.0
      %603 = vmatpush.xpose.msra.mxu0 0.0
      %604 = vmatpush.xpose.msra.mxu0 0.0
      %605 = vmatpush.xpose.msra.mxu0 0.0
      %606 = vmatpush.xpose.msra.mxu0 0.0
      %607 = vmatpush.xpose.msra.mxu0 0.0
      %608 = vmatpush.xpose.msra.mxu0 0.0
      %609 = vmatpush.xpose.msra.mxu0 0.0
      %610 = vmatpush.xpose.msra.mxu0 0.0
      %611 = vmatpush.xpose.msra.mxu0 %v596
      %612 = vmatpush.xpose.msra.mxu0 %v593
      %613 = vmatpush.xpose.msra.mxu0 %v590
      %614 = vmatmul.f32.gmra.mxu0 %v581
      %v615 = vpop.f32.mrf.mxu0
      %v616 = vadd.f32 0.0, %v615
      %617 = vmatmul.f32.gmra.mxu0 %v584
      %v618 = vpop.f32.mrf.mxu0
      %v619 = vadd.f32 0.0, %v618
      %620 = vmatmul.f32.gmra.mxu0 %v587
      %v621 = vpop.f32.mrf.mxu0
      %v622 = vadd.f32 0.0, %v621
      %623 = vdwg.mxu0
      %v624 = vsel %vm319, %v616, -inf
      %625 = vmax.xlane.f32.xlu0 %v624
      %v626 = vpop.xlane.xlu0 %625
      %v627 = vsel %vm319, %v619, -inf
      %628 = vmax.xlane.f32.xlu0 %v627
      %v629 = vpop.xlane.xlu0 %628
      %v630 = vsel %vm319, %v622, -inf
      %631 = vmax.xlane.f32.xlu0 %v630
      %v632 = vpop.xlane.xlu0 %631
      %v633 = vsub.f32 %v616, %v626
      %v634 = vsub.f32 %v619, %v629
      %v635 = vsub.f32 %v622, %v632
      %v636 = vmul.f32 %v633, 1.442695
      %v637 = vpow.pop %v636
      %v638 = vmul.f32 %v634, 1.442695
      %v639 = vpow.pop %v638
      %v640 = vmul.f32 %v635, 1.442695
      %v641 = vpow.pop %v640
      %v642 = vsel %vm319, %v637, 0.0
      %643 = vadd.xlane.f32.xlu0 %v642
      %v644 = vpop.xlane.xlu0 %643
      %v645 = vsel %vm319, %v639, 0.0
      %646 = vadd.xlane.f32.xlu0 %v645
      %v647 = vpop.xlane.xlu0 %646
      %v648 = vsel %vm319, %v641, 0.0
      %649 = vadd.xlane.f32.xlu0 %v648
      %v650 = vpop.xlane.xlu0 %649
      %v651 = vrcp.pop %v644
      %v652 = vrcp.pop %v647
      %v653 = vrcp.pop %v650
      %v654 = vmul.f32 %v644, %v651
      %v655 = vmul.f32 %v647, %v652
      %v656 = vmul.f32 %v650, %v653
      %v657 = vsub.f32 2.0, %v654
      %v658 = vsub.f32 2.0, %v655
      %v659 = vsub.f32 2.0, %v656
      %v660 = vmul.f32 %v651, %v657
      %v661 = vmul.f32 %v652, %v658
      %v662 = vmul.f32 %v653, %v659
      %v663 = vmul.f32 %v637, %v660
      %v664 = vmul.f32 %v639, %v661
      %v665 = vmul.f32 %v641, %v662
      %v667 = vsel %vm319, %v663, 0
      %v670 = vsel %vm319, %v664, 0
      %v673 = vsel %vm319, %v665, 0
      %675 = vmatpush.msra.mxu0 0.0
      %676 = vmatpush.msra.mxu0 0.0
      %677 = vmatpush.msra.mxu0 0.0
      %678 = vmatpush.msra.mxu0 0.0
      %679 = vmatpush.msra.mxu0 0.0
      %680 = vmatpush.msra.mxu0 0.0
      %681 = vmatpush.msra.mxu0 0.0
      %682 = vmatpush.msra.mxu0 0.0
      %683 = vmatpush.msra.mxu0 0.0
      %684 = vmatpush.msra.mxu0 0.0
      %685 = vmatpush.msra.mxu0 0.0
      %686 = vmatpush.msra.mxu0 0.0
      %687 = vmatpush.msra.mxu0 0.0
      %688 = vmatpush.msra.mxu0 %v579
      %689 = vmatpush.msra.mxu0 %v578
      %690 = vmatpush.msra.mxu0 %v577
      %691 = vmatmul.f32.gmra.mxu0 %v667
      %v692 = vpop.f32.mrf.mxu0
      %v693 = vadd.f32 0.0, %v692
      %694 = vmatmul.f32.gmra.mxu0 %v670
      %v695 = vpop.f32.mrf.mxu0
      %v696 = vadd.f32 0.0, %v695
      %697 = vmatmul.f32.gmra.mxu0 %v673
      %v698 = vpop.f32.mrf.mxu0
      %v699 = vadd.f32 0.0, %v698
      %700 = vdwg.mxu0
      %s701 = scalar_lea.vmem %s3, 2
      %v702 = vld [vmem:[%s701] sm:$0x1]
      %v704 = vperm.slane %v702, 0
      %v706 = vmul.f32 %v693, %v704
      %v707 = vmul.f32 %v696, %v704
      %v708 = vmul.f32 %v699, %v704
      %s709 = scalar_lea.vmem %s4, 2
      %v710 = vld [vmem:[%s709] sm:$0x1]
      %v712 = vperm.slane %v710, 0
      %v714 = vadd.f32 %v706, %v712
      %v715 = vadd.f32 %v707, %v712
      %v716 = vadd.f32 %v708, %v712
      %s717 = scalar_lea.vmem %s264, 48
      %718 = vst.msk [vmem:[%s717] sm:$0xff] %vm411, %v714
      %719 = vst.msk [vmem:[%s717 + $0x8] sm:$0xff] %vm411, %v715
      %720 = vst.msk [vmem:[%s717 + $0x10] sm:$0xff] %vm411, %v716
      %s721 = scalar_lea.vmem %s249, 72
      %v722 = vld [vmem:[%s721] sm:$0xff]
      %v723 = vld [vmem:[%s721 + $0x8] sm:$0xff]
      %v724 = vld [vmem:[%s721 + $0x10] sm:$0xff]
      %s725 = scalar_lea.vmem %s254, 72
      %v726 = vld [vmem:[%s725] sm:$0xff]
      %v727 = vld [vmem:[%s725 + $0x8] sm:$0xff]
      %v728 = vld [vmem:[%s725 + $0x10] sm:$0xff]
      %s729 = scalar_lea.vmem %s259, 72
      %v730 = vld [vmem:[%s729] sm:$0xff]
      %v731 = vld [vmem:[%s729 + $0x8] sm:$0xff]
      %v732 = vld [vmem:[%s729 + $0x10] sm:$0xff]
      %v734 = vsel %vm274, %v722, 0
      %v737 = vsel %vm274, %v723, 0
      %v740 = vsel %vm274, %v724, 0
      %v743 = vsel %vm274, %v726, 0
      %v746 = vsel %vm274, %v727, 0
      %v749 = vsel %vm274, %v728, 0
      %751 = vmatpush.xpose.msra.mxu0 0.0
      %752 = vmatpush.xpose.msra.mxu0 0.0
      %753 = vmatpush.xpose.msra.mxu0 0.0
      %754 = vmatpush.xpose.msra.mxu0 0.0
      %755 = vmatpush.xpose.msra.mxu0 0.0
      %756 = vmatpush.xpose.msra.mxu0 0.0
      %757 = vmatpush.xpose.msra.mxu0 0.0
      %758 = vmatpush.xpose.msra.mxu0 0.0
      %759 = vmatpush.xpose.msra.mxu0 0.0
      %760 = vmatpush.xpose.msra.mxu0 0.0
      %761 = vmatpush.xpose.msra.mxu0 0.0
      %762 = vmatpush.xpose.msra.mxu0 0.0
      %763 = vmatpush.xpose.msra.mxu0 0.0
      %764 = vmatpush.xpose.msra.mxu0 %v749
      %765 = vmatpush.xpose.msra.mxu0 %v746
      %766 = vmatpush.xpose.msra.mxu0 %v743
      %767 = vmatmul.f32.gmra.mxu0 %v734
      %v768 = vpop.f32.mrf.mxu0
      %v769 = vadd.f32 0.0, %v768
      %770 = vmatmul.f32.gmra.mxu0 %v737
      %v771 = vpop.f32.mrf.mxu0
      %v772 = vadd.f32 0.0, %v771
      %773 = vmatmul.f32.gmra.mxu0 %v740
      %v774 = vpop.f32.mrf.mxu0
      %v775 = vadd.f32 0.0, %v774
      %776 = vdwg.mxu0
      %v777 = vsel %vm319, %v769, -inf
      %778 = vmax.xlane.f32.xlu0 %v777
      %v779 = vpop.xlane.xlu0 %778
      %v780 = vsel %vm319, %v772, -inf
      %781 = vmax.xlane.f32.xlu0 %v780
      %v782 = vpop.xlane.xlu0 %781
      %v783 = vsel %vm319, %v775, -inf
      %784 = vmax.xlane.f32.xlu0 %v783
      %v785 = vpop.xlane.xlu0 %784
      %v786 = vsub.f32 %v769, %v779
      %v787 = vsub.f32 %v772, %v782
      %v788 = vsub.f32 %v775, %v785
      %v789 = vmul.f32 %v786, 1.442695
      %v790 = vpow.pop %v789
      %v791 = vmul.f32 %v787, 1.442695
      %v792 = vpow.pop %v791
      %v793 = vmul.f32 %v788, 1.442695
      %v794 = vpow.pop %v793
      %v795 = vsel %vm319, %v790, 0.0
      %796 = vadd.xlane.f32.xlu0 %v795
      %v797 = vpop.xlane.xlu0 %796
      %v798 = vsel %vm319, %v792, 0.0
      %799 = vadd.xlane.f32.xlu0 %v798
      %v800 = vpop.xlane.xlu0 %799
      %v801 = vsel %vm319, %v794, 0.0
      %802 = vadd.xlane.f32.xlu0 %v801
      %v803 = vpop.xlane.xlu0 %802
      %v804 = vrcp.pop %v797
      %v805 = vrcp.pop %v800
      %v806 = vrcp.pop %v803
      %v807 = vmul.f32 %v797, %v804
      %v808 = vmul.f32 %v800, %v805
      %v809 = vmul.f32 %v803, %v806
      %v810 = vsub.f32 2.0, %v807
      %v811 = vsub.f32 2.0, %v808
      %v812 = vsub.f32 2.0, %v809
      %v813 = vmul.f32 %v804, %v810
      %v814 = vmul.f32 %v805, %v811
      %v815 = vmul.f32 %v806, %v812
      %v816 = vmul.f32 %v790, %v813
      %v817 = vmul.f32 %v792, %v814
      %v818 = vmul.f32 %v794, %v815
      %v820 = vsel %vm319, %v816, 0
      %v823 = vsel %vm319, %v817, 0
      %v826 = vsel %vm319, %v818, 0
      %828 = vmatpush.msra.mxu0 0.0
      %829 = vmatpush.msra.mxu0 0.0
      %830 = vmatpush.msra.mxu0 0.0
      %831 = vmatpush.msra.mxu0 0.0
      %832 = vmatpush.msra.mxu0 0.0
      %833 = vmatpush.msra.mxu0 0.0
      %834 = vmatpush.msra.mxu0 0.0
      %835 = vmatpush.msra.mxu0 0.0
      %836 = vmatpush.msra.mxu0 0.0
      %837 = vmatpush.msra.mxu0 0.0
      %838 = vmatpush.msra.mxu0 0.0
      %839 = vmatpush.msra.mxu0 0.0
      %840 = vmatpush.msra.mxu0 0.0
      %841 = vmatpush.msra.mxu0 %v732
      %842 = vmatpush.msra.mxu0 %v731
      %843 = vmatpush.msra.mxu0 %v730
      %844 = vmatmul.f32.gmra.mxu0 %v820
      %v845 = vpop.f32.mrf.mxu0
      %v846 = vadd.f32 0.0, %v845
      %847 = vmatmul.f32.gmra.mxu0 %v823
      %v848 = vpop.f32.mrf.mxu0
      %v849 = vadd.f32 0.0, %v848
      %850 = vmatmul.f32.gmra.mxu0 %v826
      %v851 = vpop.f32.mrf.mxu0
      %v852 = vadd.f32 0.0, %v851
      %853 = vdwg.mxu0
      %s854 = scalar_lea.vmem %s3, 3
      %v855 = vld [vmem:[%s854] sm:$0x1]
      %v857 = vperm.slane %v855, 0
      %v859 = vmul.f32 %v846, %v857
      %v860 = vmul.f32 %v849, %v857
      %v861 = vmul.f32 %v852, %v857
      %s862 = scalar_lea.vmem %s4, 3
      %v863 = vld [vmem:[%s862] sm:$0x1]
      %v865 = vperm.slane %v863, 0
      %v867 = vadd.f32 %v859, %v865
      %v868 = vadd.f32 %v860, %v865
      %v869 = vadd.f32 %v861, %v865
      %s870 = scalar_lea.vmem %s264, 72
      %871 = vst.msk [vmem:[%s870] sm:$0xff] %vm411, %v867
      %872 = vst.msk [vmem:[%s870 + $0x8] sm:$0xff] %vm411, %v868
      %873 = vst.msk [vmem:[%s870 + $0x10] sm:$0xff] %vm411, %v869
      %p874 = scmp.lt.s32.totalorder %s16, 31
      %s875 = scalar_select %p874, %s16, 31
      %s876 = smul.addr %s875, 12
      %s877 = smul.addr %s876, 8
      %s878 = scalar_lea.vmem %s5, %s877
      // Predicated region
      $region41: #{axial_attention_forward.3} parent=39 // pred_check
        %p879 = pneg %p154
      $region42: #{axial_attention_forward.3} parent=39 // pred_check_branch
        %881 = sbr.rel (%p879) target = $region44
      $region43: #{axial_attention_forward.3} parent=39 // pred_region
        _
      $region44: #{axial_attention_forward.3} parent=39 // pred_fallthru
        _
    $region40: #{axial_attention_forward.3} parent=5 // pred_fallthru
      _
    %p882 = scmp.le.s32.totalorder 2, %s11
    // Predicated region
    $region45: #{axial_attention_forward.3} parent=5 // pred_check
      %p883 = pneg %p882
    $region46: #{axial_attention_forward.3} parent=5 // pred_check_branch
      %885 = sbr.rel (%p883) target = $region48
    $region47: #{axial_attention_forward.3} parent=5 // pred_region
      %s886 = ssub.s32 %s11, 2
      // Predicated region
      $region49: #{axial_attention_forward.3} parent=47 // pred_check
        %p887 = pneg %p160
      $region50: #{axial_attention_forward.3} parent=47 // pred_check_branch
        %889 = sbr.rel (%p887) target = $region52
      $region51: #{axial_attention_forward.3} parent=47 // pred_region
        %p890 = scmp.lt.s32.totalorder %s17, 31
        %s891 = scalar_select %p890, %s17, 31
        %s892 = smul.addr %s891, 12
        %s893 = smul.addr %s892, 8
        %s894 = scalar_lea.vmem %s5, %s893
      $region52: #{axial_attention_forward.3} parent=47 // pred_fallthru
        _
    $region48: #{axial_attention_forward.3} parent=5 // pred_fallthru
      _
  $region6: #{axial_attention_forward.3} parent=0 // loop_footer
    %s15 = sadd.s32 1, %s11
  $region7: #{axial_attention_forward.3} parent=0 // loop_footer_branch
    %10 = sbr.rel target = $region3
  $region8: #{axial_attention_forward.3} parent=0 // loop_exit
    _

</llo_original>
